<compile_context>
chip_gen: v7x
topology: tpu7x:2x2x1
jax: 0.10.0
libtpu: 0.0.40
codegen_flags: <defaults>
</compile_context>

<pallas_src>
import functools
import math

import jax
import jax.numpy as jnp
from jax.experimental import pallas as pl
from jax.experimental.pallas import tpu as pltpu


def _round_up(x, m):
    return ((x + m - 1) // m) * m


def _choose_col_tile(B, C, K, V, itemsize=4, budget_bytes=6 * 1024 * 1024):
    """Column tile (packed batch*seq axis) for the propagation kernel.

    Multiple of 128 (lane alignment -> lane-dense blocks/stores), sized so the
    double-buffered x / ho blocks stay far below the scoped-VMEM defaults
    (16 MiB v5e, 32 MiB v6e/v7x; 64 MiB physical on v7x).
    """
    per_col = itemsize * max(V, 8) * (C + K) * 5   # in x2 + out x2 + live values
    tb = max(128, (budget_bytes // per_col) // 128 * 128)
    tb = min(tb, 1024)
    tb = min(tb, _round_up(B, 128))                # do not over-pad tiny batches
    return int(tb)


def _largest_aligned_divisor(m, align, cap):
    """Largest d with align | d, d | m, d <= cap (m is a multiple of align)."""
    q = m // align
    best = 1
    for mult in range(1, max(1, cap // align) + 1):
        if q % mult == 0:
            best = mult
    return best * align


# ---------------------------------------------------------------------------
# Kernel 1: all gdep propagation hops for one lane tile of the packed batch axis.
#   a_ref : (V, V)       row-normalized adjacency (computed once in the wrapper)
#   x_ref : (C, V, Tb)   per-channel node features, batch*seq packed into lanes
#   ho_ref: (K, V, Tb)   hop-stacked output, K = (gdep+1)*C, k = hop*C + c
# ---------------------------------------------------------------------------
def _mixprop_prop_kernel(a_ref, x_ref, ho_ref, *, gdep, alpha, mxu_dtype=None):
    C = x_ref.shape[0]
    a = a_ref[...]                                        # (V, V), resident
    a_m = a if mxu_dtype is None else a.astype(mxu_dtype)
    one_m_alpha = 1.0 - alpha

    hs = []
    axs = []
    for c in range(C):                                    # static unroll over channels
        xc = x_ref[c]                                     # (V, Tb)
        hs.append(xc)
        axs.append(alpha * xc)                            # alpha*x hoisted out of hop loop
        ho_ref[c] = xc                                    # hop 0 = x

    for i in range(1, gdep + 1):                          # static unroll over hops
        for c in range(C):
            rhs = hs[c] if mxu_dtype is None else hs[c].astype(mxu_dtype)
            prop = jnp.dot(a_m, rhs, preferred_element_type=jnp.float32)   # MXU (V,V)@(V,Tb)
            hs[c] = axs[c] + one_m_alpha * prop           # f32 mix (VPU)
            ho_ref[i * C + c] = hs[c].astype(ho_ref.dtype)


# ---------------------------------------------------------------------------
# Kernel 2: 1x1 conv (channel mixing) as (c_out, K) @ (K, Tm) + bias.
#   Lane-dense output (lane dim = Tm, a large multiple of 128).
# ---------------------------------------------------------------------------
def _mixprop_mlp_kernel(ho_ref, w_ref, b_ref, o_ref, *, mxu_dtype=None):
    w = w_ref[...]                                        # (c_out, K)
    ho = ho_ref[...]                                      # (K, Tm)
    if mxu_dtype is not None:
        w = w.astype(mxu_dtype)
        ho = ho.astype(mxu_dtype)
    acc = jnp.dot(w, ho, preferred_element_type=jnp.float32)
    o_ref[...] = (acc + b_ref[...]).astype(o_ref.dtype)


def mixprop_forward(x, adj, w, b, *, gdep, alpha, mxu_dtype=None):
    """Pallas equivalent of mixprop.forward.

    x  : (N, C, V, L) float32
    adj: (V, V)       float32
    w  : (c_out, (gdep+1)*C)   (Conv2d 1x1 weight, squeezed)
    b  : (c_out,)              (Conv2d 1x1 bias)
    returns (N, c_out, V, L)
    """
    N, C, V, L = x.shape
    c_out, K = w.shape
    assert K == (gdep + 1) * C
    assert adj.shape == (V, V)

    # Hoisted adjacency normalization: tiny (V,V) op, done once, not per grid step.
    adj_i = adj + jnp.eye(V, dtype=adj.dtype)
    a = adj_i / jnp.sum(adj_i, axis=1, keepdims=True)

    # Layout plumbing: (N,C,V,L) -> (C, V, B) with B = N*L packed into lanes.
    B = N * L
    x_p = jnp.transpose(x, (1, 2, 0, 3)).reshape(C, V, B)
    Tb = _choose_col_tile(B, C, K, V)
    Bp = _round_up(B, Tb)
    if Bp != B:
        x_p = jnp.pad(x_p, ((0, 0), (0, 0), (0, Bp - B)))
    grid_b = Bp // Tb

    prop_kernel = functools.partial(_mixprop_prop_kernel, gdep=gdep, alpha=alpha,
                                    mxu_dtype=mxu_dtype)
    ho = pl.pallas_call(
        prop_kernel,
        out_shape=jax.ShapeDtypeStruct((K, V, Bp), x.dtype),
        grid_spec=pltpu.PrefetchScalarGridSpec(
            num_scalar_prefetch=0,
            grid=(grid_b,),
            in_specs=[
                pl.BlockSpec((V, V), lambda t: (0, 0)),        # adjacency, resident
                pl.BlockSpec((C, V, Tb), lambda t: (0, 0, t)),
            ],
            out_specs=pl.BlockSpec((K, V, Tb), lambda t: (0, 0, t)),
        ),
        compiler_params=pltpu.CompilerParams(
            dimension_semantics=("parallel",),
        ),
        cost_estimate=pl.CostEstimate(
            flops=int(2 * gdep * C * V * V * Bp),
            transcendentals=0,
            bytes_accessed=int(4 * (V * V + C * V * Bp + K * V * Bp)),
        ),
    )(a, x_p)

    # ho is already in the (K, V*Bp) layout the 1x1 conv consumes:
    # only a *free* row-major reshape, no XLA transpose / HBM relayout pass.
    M = V * Bp
    ho2 = ho.reshape(K, M)
    Tm = _largest_aligned_divisor(M, 128, cap=4096)

    mlp_kernel = functools.partial(_mixprop_mlp_kernel, mxu_dtype=mxu_dtype)
    y2 = pl.pallas_call(
        mlp_kernel,
        out_shape=jax.ShapeDtypeStruct((c_out, M), x.dtype),
        grid_spec=pltpu.PrefetchScalarGridSpec(
            num_scalar_prefetch=0,
            grid=(M // Tm,),
            in_specs=[
                pl.BlockSpec((K, Tm), lambda t: (0, t)),
                pl.BlockSpec((c_out, K), lambda t: (0, 0)),
                pl.BlockSpec((c_out, 1), lambda t: (0, 0)),
            ],
            out_specs=pl.BlockSpec((c_out, Tm), lambda t: (0, t)),
        ),
        compiler_params=pltpu.CompilerParams(
            dimension_semantics=("parallel",),
        ),
        cost_estimate=pl.CostEstimate(
            flops=int(2 * c_out * K * M),
            transcendentals=0,
            bytes_accessed=int(4 * (K * M + c_out * K + c_out + c_out * M)),
        ),
    )(ho2, w, b.reshape(c_out, 1))

    # (c_out, V*Bp) -> (N, c_out, V, L); cheap, operates only on the small output.
    y = y2.reshape(c_out, V, Bp)[:, :, :B].reshape(c_out, V, N, L)
    return jnp.transpose(y, (2, 0, 1, 3))


class MixProp:
    """JAX/Pallas port of the PyTorch mixprop module (forward pass)."""

    def __init__(self, c_in, c_out, gdep, dropout, alpha, key=None):
        if key is None:
            key = jax.random.PRNGKey(0)
        self.gdep = gdep
        self.alpha = alpha
        self.dropout = dropout  # stored but unused in forward, same as reference
        fan_in = (gdep + 1) * c_in
        bound = 1.0 / math.sqrt(fan_in)
        k_w, k_b = jax.random.split(key)
        # mirrors Conv2d(kernel_size=1) default init scale; weight squeezed to 2-D
        self.w = jax.random.uniform(k_w, (c_out, fan_in),
                                    minval=-bound, maxval=bound, dtype=jnp.float32)
        self.b = jax.random.uniform(k_b, (c_out,),
                                    minval=-bound, maxval=bound, dtype=jnp.float32)
        self._forward = jax.jit(
            functools.partial(mixprop_forward, gdep=gdep, alpha=alpha))

    def __call__(self, x, adj):
        return self._forward(x, adj, self.w, self.b)


# ---------------------------------------------------------------------------
# Plain-JAX reference (mirrors the PyTorch code) for the correctness check.
# ---------------------------------------------------------------------------
def mixprop_reference(x, adj, w, b, gdep, alpha):
    V = adj.shape[0]
    adj_i = adj + jnp.eye(V, dtype=adj.dtype)
    a = adj_i / adj_i.sum(axis=1)[:, None]
    h = x
    outs = [h]
    for _ in range(gdep):
        h = alpha * x + (1.0 - alpha) * jnp.einsum(
            'ncwl,vw->ncvl', h, a, precision=jax.lax.Precision.HIGHEST)
        outs.append(h)
    ho = jnp.concatenate(outs, axis=1)                        # (N, K, V, L)
    y = jnp.einsum('nkvl,ok->novl', ho, w,
                   precision=jax.lax.Precision.HIGHEST)
    return y + b[None, :, None, None]


if __name__ == "__main__":
    key = jax.random.PRNGKey(0)
    N, C_in, V, L = 2, 4, 16, 8            # batch, channels, nodes, seq
    c_out, gdep, alpha, dropout = 8, 2, 0.05, 0.3

    k_x, k_adj, k_mod = jax.random.split(key, 3)
    x = jax.random.normal(k_x, (N, C_in, V, L), dtype=jnp.float32)
    # non-negative adjacency (as produced by MTGNN's graph constructor) so the
    # row sums of adj + I are >= 1
    adj = jax.random.uniform(k_adj, (V, V), dtype=jnp.float32)

    module = MixProp(C_in, c_out, gdep, dropout, alpha, key=k_mod)

    out = jax.block_until_ready(module(x, adj))
    ref = mixprop_reference(x, adj, module.w, module.b, gdep, alpha)

    assert out.shape == (N, c_out, V, L)
    assert out.dtype == jnp.float32
    max_err = float(jnp.max(jnp.abs(out - ref)))
    assert jnp.allclose(out, ref, rtol=1e-3, atol=1e-3), (
        f"mixprop mismatch, max abs err = {max_err}")

    print("KERNEL_OK")
</pallas_src>

<mosaic_0001>
module attributes {stable_mosaic.version = 11 : i64} {
  func.func @_mixprop_prop_kernel(%arg0: i32, %arg1: memref<16x16xf32, #tpu.memory_space<vmem>>, %arg2: memref<4x16x128xf32, #tpu.memory_space<vmem>>, %arg3: memref<12x16x128xf32, #tpu.memory_space<vmem>>) attributes {dimension_semantics = [#tpu.dimension_semantics<parallel>], iteration_bounds = array<i64: 1>, scalar_prefetch = 0 : i64, scratch_operands = 0 : i64, tpu.core_type = #tpu.core_type<tc>, window_params = [{pipeline_mode = #tpu.pipeline_mode<synchronous>, transform_indices = @transform_0, window_bounds = array<i64: 16, 16>}, {transform_indices = @transform_1, window_bounds = array<i64: 4, 16, 128>}, {transform_indices = @transform_2, window_bounds = array<i64: 12, 16, 128>}]} {
    %c0 = arith.constant 0 : index
    %c0_0 = arith.constant 0 : index
    %0 = vector.load %arg1[%c0, %c0_0] : memref<16x16xf32, #tpu.memory_space<vmem>>, vector<16x16xf32>
    %c0_1 = arith.constant 0 : index
    %c0_2 = arith.constant 0 : index
    %c0_3 = arith.constant 0 : index
    %1 = vector.load %arg2[%c0_1, %c0_2, %c0_3] : memref<4x16x128xf32, #tpu.memory_space<vmem>>, vector<1x16x128xf32>
    %2 = vector.shape_cast %1 : vector<1x16x128xf32> to vector<16x128xf32>
    %cst = arith.constant 5.000000e-02 : f32
    %3 = vector.broadcast %cst : f32 to vector<16x128xf32>
    %4 = arith.mulf %3, %2 : vector<16x128xf32>
    %c0_4 = arith.constant 0 : index
    %c0_5 = arith.constant 0 : index
    %c0_6 = arith.constant 0 : index
    %5 = vector.load %arg3[%c0_4, %c0_5, %c0_6] : memref<12x16x128xf32, #tpu.memory_space<vmem>>, vector<1x16x128xf32>
    %6 = vector.shape_cast %5 : vector<1x16x128xf32> to vector<16x128xf32>
    %7 = vector.shape_cast %2 : vector<16x128xf32> to vector<1x16x128xf32>
    tpu.vector_store %arg3[%c0_4, %c0_5, %c0_6], %7 {strides = array<i32>} : memref<12x16x128xf32, #tpu.memory_space<vmem>>, vector<1x16x128xf32>,
    %c1 = arith.constant 1 : index
    %c0_7 = arith.constant 0 : index
    %c0_8 = arith.constant 0 : index
    %8 = vector.load %arg2[%c1, %c0_7, %c0_8] : memref<4x16x128xf32, #tpu.memory_space<vmem>>, vector<1x16x128xf32>
    %9 = vector.shape_cast %8 : vector<1x16x128xf32> to vector<16x128xf32>
    %cst_9 = arith.constant 5.000000e-02 : f32
    %10 = vector.broadcast %cst_9 : f32 to vector<16x128xf32>
    %11 = arith.mulf %10, %9 : vector<16x128xf32>
    %c1_10 = arith.constant 1 : index
    %c0_11 = arith.constant 0 : index
    %c0_12 = arith.constant 0 : index
    %12 = vector.load %arg3[%c1_10, %c0_11, %c0_12] : memref<12x16x128xf32, #tpu.memory_space<vmem>>, vector<1x16x128xf32>
    %13 = vector.shape_cast %12 : vector<1x16x128xf32> to vector<16x128xf32>
    %14 = vector.shape_cast %9 : vector<16x128xf32> to vector<1x16x128xf32>
    tpu.vector_store %arg3[%c1_10, %c0_11, %c0_12], %14 {strides = array<i32>} : memref<12x16x128xf32, #tpu.memory_space<vmem>>, vector<1x16x128xf32>,
    %c2 = arith.constant 2 : index
    %c0_13 = arith.constant 0 : index
    %c0_14 = arith.constant 0 : index
    %15 = vector.load %arg2[%c2, %c0_13, %c0_14] : memref<4x16x128xf32, #tpu.memory_space<vmem>>, vector<1x16x128xf32>
    %16 = vector.shape_cast %15 : vector<1x16x128xf32> to vector<16x128xf32>
    %cst_15 = arith.constant 5.000000e-02 : f32
    %17 = vector.broadcast %cst_15 : f32 to vector<16x128xf32>
    %18 = arith.mulf %17, %16 : vector<16x128xf32>
    %c2_16 = arith.constant 2 : index
    %c0_17 = arith.constant 0 : index
    %c0_18 = arith.constant 0 : index
    %19 = vector.load %arg3[%c2_16, %c0_17, %c0_18] : memref<12x16x128xf32, #tpu.memory_space<vmem>>, vector<1x16x128xf32>
    %20 = vector.shape_cast %19 : vector<1x16x128xf32> to vector<16x128xf32>
    %21 = vector.shape_cast %16 : vector<16x128xf32> to vector<1x16x128xf32>
    tpu.vector_store %arg3[%c2_16, %c0_17, %c0_18], %21 {strides = array<i32>} : memref<12x16x128xf32, #tpu.memory_space<vmem>>, vector<1x16x128xf32>,
    %c3 = arith.constant 3 : index
    %c0_19 = arith.constant 0 : index
    %c0_20 = arith.constant 0 : index
    %22 = vector.load %arg2[%c3, %c0_19, %c0_20] : memref<4x16x128xf32, #tpu.memory_space<vmem>>, vector<1x16x128xf32>
    %23 = vector.shape_cast %22 : vector<1x16x128xf32> to vector<16x128xf32>
    %cst_21 = arith.constant 5.000000e-02 : f32
    %24 = vector.broadcast %cst_21 : f32 to vector<16x128xf32>
    %25 = arith.mulf %24, %23 : vector<16x128xf32>
    %c3_22 = arith.constant 3 : index
    %c0_23 = arith.constant 0 : index
    %c0_24 = arith.constant 0 : index
    %26 = vector.load %arg3[%c3_22, %c0_23, %c0_24] : memref<12x16x128xf32, #tpu.memory_space<vmem>>, vector<1x16x128xf32>
    %27 = vector.shape_cast %26 : vector<1x16x128xf32> to vector<16x128xf32>
    %28 = vector.shape_cast %23 : vector<16x128xf32> to vector<1x16x128xf32>
    tpu.vector_store %arg3[%c3_22, %c0_23, %c0_24], %28 {strides = array<i32>} : memref<12x16x128xf32, #tpu.memory_space<vmem>>, vector<1x16x128xf32>,
    %cst_25 = arith.constant dense<0.000000e+00> : vector<16x128xf32>
    %29 = tpu.matmul %0, %2, %cst_25 {dimension_numbers = #tpu.dot_dimension_numbers<[1], [0], [0], [1], [0, 0, 1, 1], [], []>} : vector<16x16xf32>, vector<16x128xf32>, vector<16x128xf32> -> vector<16x128xf32>
    %cst_26 = arith.constant 0.949999988 : f32
    %30 = vector.broadcast %cst_26 : f32 to vector<16x128xf32>
    %31 = arith.mulf %30, %29 : vector<16x128xf32>
    %32 = arith.addf %4, %31 : vector<16x128xf32>
    %c4 = arith.constant 4 : index
    %c0_27 = arith.constant 0 : index
    %c0_28 = arith.constant 0 : index
    %33 = vector.load %arg3[%c4, %c0_27, %c0_28] : memref<12x16x128xf32, #tpu.memory_space<vmem>>, vector<1x16x128xf32>
    %34 = vector.shape_cast %33 : vector<1x16x128xf32> to vector<16x128xf32>
    %35 = vector.shape_cast %32 : vector<16x128xf32> to vector<1x16x128xf32>
    tpu.vector_store %arg3[%c4, %c0_27, %c0_28], %35 {strides = array<i32>} : memref<12x16x128xf32, #tpu.memory_space<vmem>>, vector<1x16x128xf32>,
    %cst_29 = arith.constant dense<0.000000e+00> : vector<16x128xf32>
    %36 = tpu.matmul %0, %9, %cst_29 {dimension_numbers = #tpu.dot_dimension_numbers<[1], [0], [0], [1], [0, 0, 1, 1], [], []>} : vector<16x16xf32>, vector<16x128xf32>, vector<16x128xf32> -> vector<16x128xf32>
    %cst_30 = arith.constant 0.949999988 : f32
    %37 = vector.broadcast %cst_30 : f32 to vector<16x128xf32>
    %38 = arith.mulf %37, %36 : vector<16x128xf32>
    %39 = arith.addf %11, %38 : vector<16x128xf32>
    %c5 = arith.constant 5 : index
    %c0_31 = arith.constant 0 : index
    %c0_32 = arith.constant 0 : index
    %40 = vector.load %arg3[%c5, %c0_31, %c0_32] : memref<12x16x128xf32, #tpu.memory_space<vmem>>, vector<1x16x128xf32>
    %41 = vector.shape_cast %40 : vector<1x16x128xf32> to vector<16x128xf32>
    %42 = vector.shape_cast %39 : vector<16x128xf32> to vector<1x16x128xf32>
    tpu.vector_store %arg3[%c5, %c0_31, %c0_32], %42 {strides = array<i32>} : memref<12x16x128xf32, #tpu.memory_space<vmem>>, vector<1x16x128xf32>,
    %cst_33 = arith.constant dense<0.000000e+00> : vector<16x128xf32>
    %43 = tpu.matmul %0, %16, %cst_33 {dimension_numbers = #tpu.dot_dimension_numbers<[1], [0], [0], [1], [0, 0, 1, 1], [], []>} : vector<16x16xf32>, vector<16x128xf32>, vector<16x128xf32> -> vector<16x128xf32>
    %cst_34 = arith.constant 0.949999988 : f32
    %44 = vector.broadcast %cst_34 : f32 to vector<16x128xf32>
    %45 = arith.mulf %44, %43 : vector<16x128xf32>
    %46 = arith.addf %18, %45 : vector<16x128xf32>
    %c6 = arith.constant 6 : index
    %c0_35 = arith.constant 0 : index
    %c0_36 = arith.constant 0 : index
    %47 = vector.load %arg3[%c6, %c0_35, %c0_36] : memref<12x16x128xf32, #tpu.memory_space<vmem>>, vector<1x16x128xf32>
    %48 = vector.shape_cast %47 : vector<1x16x128xf32> to vector<16x128xf32>
    %49 = vector.shape_cast %46 : vector<16x128xf32> to vector<1x16x128xf32>
    tpu.vector_store %arg3[%c6, %c0_35, %c0_36], %49 {strides = array<i32>} : memref<12x16x128xf32, #tpu.memory_space<vmem>>, vector<1x16x128xf32>,
    %cst_37 = arith.constant dense<0.000000e+00> : vector<16x128xf32>
    %50 = tpu.matmul %0, %23, %cst_37 {dimension_numbers = #tpu.dot_dimension_numbers<[1], [0], [0], [1], [0, 0, 1, 1], [], []>} : vector<16x16xf32>, vector<16x128xf32>, vector<16x128xf32> -> vector<16x128xf32>
    %cst_38 = arith.constant 0.949999988 : f32
    %51 = vector.broadcast %cst_38 : f32 to vector<16x128xf32>
    %52 = arith.mulf %51, %50 : vector<16x128xf32>
    %53 = arith.addf %25, %52 : vector<16x128xf32>
    %c7 = arith.constant 7 : index
    %c0_39 = arith.constant 0 : index
    %c0_40 = arith.constant 0 : index
    %54 = vector.load %arg3[%c7, %c0_39, %c0_40] : memref<12x16x128xf32, #tpu.memory_space<vmem>>, vector<1x16x128xf32>
    %55 = vector.shape_cast %54 : vector<1x16x128xf32> to vector<16x128xf32>
    %56 = vector.shape_cast %53 : vector<16x128xf32> to vector<1x16x128xf32>
    tpu.vector_store %arg3[%c7, %c0_39, %c0_40], %56 {strides = array<i32>} : memref<12x16x128xf32, #tpu.memory_space<vmem>>, vector<1x16x128xf32>,
    %cst_41 = arith.constant dense<0.000000e+00> : vector<16x128xf32>
    %57 = tpu.matmul %0, %32, %cst_41 {dimension_numbers = #tpu.dot_dimension_numbers<[1], [0], [0], [1], [0, 0, 1, 1], [], []>} : vector<16x16xf32>, vector<16x128xf32>, vector<16x128xf32> -> vector<16x128xf32>
    %cst_42 = arith.constant 0.949999988 : f32
    %58 = vector.broadcast %cst_42 : f32 to vector<16x128xf32>
    %59 = arith.mulf %58, %57 : vector<16x128xf32>
    %60 = arith.addf %4, %59 : vector<16x128xf32>
    %c8 = arith.constant 8 : index
    %c0_43 = arith.constant 0 : index
    %c0_44 = arith.constant 0 : index
    %61 = vector.load %arg3[%c8, %c0_43, %c0_44] : memref<12x16x128xf32, #tpu.memory_space<vmem>>, vector<1x16x128xf32>
    %62 = vector.shape_cast %61 : vector<1x16x128xf32> to vector<16x128xf32>
    %63 = vector.shape_cast %60 : vector<16x128xf32> to vector<1x16x128xf32>
    tpu.vector_store %arg3[%c8, %c0_43, %c0_44], %63 {strides = array<i32>} : memref<12x16x128xf32, #tpu.memory_space<vmem>>, vector<1x16x128xf32>,
    %cst_45 = arith.constant dense<0.000000e+00> : vector<16x128xf32>
    %64 = tpu.matmul %0, %39, %cst_45 {dimension_numbers = #tpu.dot_dimension_numbers<[1], [0], [0], [1], [0, 0, 1, 1], [], []>} : vector<16x16xf32>, vector<16x128xf32>, vector<16x128xf32> -> vector<16x128xf32>
    %cst_46 = arith.constant 0.949999988 : f32
    %65 = vector.broadcast %cst_46 : f32 to vector<16x128xf32>
    %66 = arith.mulf %65, %64 : vector<16x128xf32>
    %67 = arith.addf %11, %66 : vector<16x128xf32>
    %c9 = arith.constant 9 : index
    %c0_47 = arith.constant 0 : index
    %c0_48 = arith.constant 0 : index
    %68 = vector.load %arg3[%c9, %c0_47, %c0_48] : memref<12x16x128xf32, #tpu.memory_space<vmem>>, vector<1x16x128xf32>
    %69 = vector.shape_cast %68 : vector<1x16x128xf32> to vector<16x128xf32>
    %70 = vector.shape_cast %67 : vector<16x128xf32> to vector<1x16x128xf32>
    tpu.vector_store %arg3[%c9, %c0_47, %c0_48], %70 {strides = array<i32>} : memref<12x16x128xf32, #tpu.memory_space<vmem>>, vector<1x16x128xf32>,
    %cst_49 = arith.constant dense<0.000000e+00> : vector<16x128xf32>
    %71 = tpu.matmul %0, %46, %cst_49 {dimension_numbers = #tpu.dot_dimension_numbers<[1], [0], [0], [1], [0, 0, 1, 1], [], []>} : vector<16x16xf32>, vector<16x128xf32>, vector<16x128xf32> -> vector<16x128xf32>
    %cst_50 = arith.constant 0.949999988 : f32
    %72 = vector.broadcast %cst_50 : f32 to vector<16x128xf32>
    %73 = arith.mulf %72, %71 : vector<16x128xf32>
    %74 = arith.addf %18, %73 : vector<16x128xf32>
    %c10 = arith.constant 10 : index
    %c0_51 = arith.constant 0 : index
    %c0_52 = arith.constant 0 : index
    %75 = vector.load %arg3[%c10, %c0_51, %c0_52] : memref<12x16x128xf32, #tpu.memory_space<vmem>>, vector<1x16x128xf32>
    %76 = vector.shape_cast %75 : vector<1x16x128xf32> to vector<16x128xf32>
    %77 = vector.shape_cast %74 : vector<16x128xf32> to vector<1x16x128xf32>
    tpu.vector_store %arg3[%c10, %c0_51, %c0_52], %77 {strides = array<i32>} : memref<12x16x128xf32, #tpu.memory_space<vmem>>, vector<1x16x128xf32>,
    %cst_53 = arith.constant dense<0.000000e+00> : vector<16x128xf32>
    %78 = tpu.matmul %0, %53, %cst_53 {dimension_numbers = #tpu.dot_dimension_numbers<[1], [0], [0], [1], [0, 0, 1, 1], [], []>} : vector<16x16xf32>, vector<16x128xf32>, vector<16x128xf32> -> vector<16x128xf32>
    %cst_54 = arith.constant 0.949999988 : f32
    %79 = vector.broadcast %cst_54 : f32 to vector<16x128xf32>
    %80 = arith.mulf %79, %78 : vector<16x128xf32>
    %81 = arith.addf %25, %80 : vector<16x128xf32>
    %c11 = arith.constant 11 : index
    %c0_55 = arith.constant 0 : index
    %c0_56 = arith.constant 0 : index
    %82 = vector.load %arg3[%c11, %c0_55, %c0_56] : memref<12x16x128xf32, #tpu.memory_space<vmem>>, vector<1x16x128xf32>
    %83 = vector.shape_cast %82 : vector<1x16x128xf32> to vector<16x128xf32>
    %84 = vector.shape_cast %81 : vector<16x128xf32> to vector<1x16x128xf32>
    tpu.vector_store %arg3[%c11, %c0_55, %c0_56], %84 {strides = array<i32>} : memref<12x16x128xf32, #tpu.memory_space<vmem>>, vector<1x16x128xf32>,
    return
  }
  func.func @transform_0(%arg0: i32) -> (i32, i32) {
    %c0_i32 = arith.constant 0 : i32
    %c0_i32_0 = arith.constant 0 : i32
    %c0_i32_1 = arith.constant 0 : i32
    return %c0_i32, %c0_i32_0 : i32, i32
  }
  func.func @transform_1(%arg0: i32) -> (i32, i32, i32) {
    %c0_i32 = arith.constant 0 : i32
    %c0_i32_0 = arith.constant 0 : i32
    %c0_i32_1 = arith.constant 0 : i32
    return %c0_i32, %c0_i32_0, %arg0 : i32, i32, i32
  }
  func.func @transform_2(%arg0: i32) -> (i32, i32, i32) {
    %c0_i32 = arith.constant 0 : i32
    %c0_i32_0 = arith.constant 0 : i32
    %c0_i32_1 = arith.constant 0 : i32
    return %c0_i32, %c0_i32_0, %arg0 : i32, i32, i32
  }
}

module attributes {stable_mosaic.version = 11 : i64} {
  func.func @_mixprop_mlp_kernel(%arg0: i32, %arg1: memref<12x2048xf32, #tpu.memory_space<vmem>>, %arg2: memref<8x12xf32, #tpu.memory_space<vmem>>, %arg3: memref<8x1xf32, #tpu.memory_space<vmem>>, %arg4: memref<8x2048xf32, #tpu.memory_space<vmem>>) attributes {dimension_semantics = [#tpu.dimension_semantics<parallel>], iteration_bounds = array<i64: 1>, scalar_prefetch = 0 : i64, scratch_operands = 0 : i64, tpu.core_type = #tpu.core_type<tc>, window_params = [{transform_indices = @transform_0, window_bounds = array<i64: 12, 2048>}, {pipeline_mode = #tpu.pipeline_mode<synchronous>, transform_indices = @transform_1, window_bounds = array<i64: 8, 12>}, {pipeline_mode = #tpu.pipeline_mode<synchronous>, transform_indices = @transform_2, window_bounds = array<i64: 8, 1>}, {transform_indices = @transform_3, window_bounds = array<i64: 8, 2048>}]} {
    %c0 = arith.constant 0 : index
    %c0_0 = arith.constant 0 : index
    %0 = vector.load %arg2[%c0, %c0_0] : memref<8x12xf32, #tpu.memory_space<vmem>>, vector<8x12xf32>
    %c0_1 = arith.constant 0 : index
    %c0_2 = arith.constant 0 : index
    %1 = vector.load %arg1[%c0_1, %c0_2] : memref<12x2048xf32, #tpu.memory_space<vmem>>, vector<12x2048xf32>
    %cst = arith.constant dense<0.000000e+00> : vector<8x2048xf32>
    %2 = tpu.matmul %0, %1, %cst {dimension_numbers = #tpu.dot_dimension_numbers<[1], [0], [0], [1], [0, 0, 1, 1], [], []>} : vector<8x12xf32>, vector<12x2048xf32>, vector<8x2048xf32> -> vector<8x2048xf32>
    %c0_3 = arith.constant 0 : index
    %c0_4 = arith.constant 0 : index
    %3 = vector.load %arg3[%c0_3, %c0_4] : memref<8x1xf32, #tpu.memory_space<vmem>>, vector<8x1xf32>
    %4 = vector.broadcast %3 : vector<8x1xf32> to vector<8x2048xf32>
    %5 = arith.addf %2, %4 : vector<8x2048xf32>
    %c0_5 = arith.constant 0 : index
    %c0_6 = arith.constant 0 : index
    %6 = vector.load %arg4[%c0_5, %c0_6] : memref<8x2048xf32, #tpu.memory_space<vmem>>, vector<8x2048xf32>
    tpu.vector_store %arg4[%c0_5, %c0_6], %5 {strides = array<i32>} : memref<8x2048xf32, #tpu.memory_space<vmem>>, vector<8x2048xf32>,
    return
  }
  func.func @transform_0(%arg0: i32) -> (i32, i32) {
    %c0_i32 = arith.constant 0 : i32
    %c0_i32_0 = arith.constant 0 : i32
    return %c0_i32, %arg0 : i32, i32
  }
  func.func @transform_1(%arg0: i32) -> (i32, i32) {
    %c0_i32 = arith.constant 0 : i32
    %c0_i32_0 = arith.constant 0 : i32
    %c0_i32_1 = arith.constant 0 : i32
    return %c0_i32, %c0_i32_0 : i32, i32
  }
  func.func @transform_2(%arg0: i32) -> (i32, i32) {
    %c0_i32 = arith.constant 0 : i32
    %c0_i32_0 = arith.constant 0 : i32
    %c0_i32_1 = arith.constant 0 : i32
    return %c0_i32, %c0_i32_0 : i32, i32
  }
  func.func @transform_3(%arg0: i32) -> (i32, i32) {
    %c0_i32 = arith.constant 0 : i32
    %c0_i32_0 = arith.constant 0 : i32
    return %c0_i32, %arg0 : i32, i32
  }
}

</mosaic_0001>

<llo_original>
// kernel: mixprop_forward.3
$region0: #{mixprop_forward.3}
  #allocation0 [shape = 'u32[]', space=smem, size = 0x4, offset = 0x4, fixed_abs, tag = 'smem constant byte address 0x4 - core index']
  #allocation1 [shape = 'u32[144,128]{1,0:T(1,128)}', space=vmem, size = 0x12000, scoped, tag = 'internal scratch']
  %s0 = inlined_call_operand.vmem [shape: f32[12,2048], index: 0, kind: input, shape index: {}]
  %s1 = inlined_call_operand.vmem [shape: f32[8,12], index: 1, kind: input, shape index: {}]
  %s2 = inlined_call_operand.vmem [shape: f32[8,1], index: 2, kind: input, shape index: {}]
  %s3 = inlined_call_operand.vmem [shape: f32[8,2048], index: 3, kind: output, shape index: {}]
  %s4 = sld [smem:[#allocation0]]
  $region22: #{mixprop_forward.3} parent=0
    _
  %s6 = ssub.s32 1, %s4
  %s7 = scalar_select 0, %s6, %s4
  // Predicated region
  $region2: #{mixprop_forward.3} parent=0 // pred_check
    _
  $region3: #{mixprop_forward.3} parent=0 // pred_check_branch
    %9 = sbr.rel (0) target = $region5
  $region4: #{mixprop_forward.3} parent=0 // pred_region
    _
  $region5: #{mixprop_forward.3} parent=0 // pred_fallthru
    _
  // Predicated region
  $region6: #{mixprop_forward.3} parent=0 // pred_check
    _
  $region7: #{mixprop_forward.3} parent=0 // pred_check_branch
    %11 = sbr.rel (0) target = $region9
  $region8: #{mixprop_forward.3} parent=0 // pred_region
    _
  $region9: #{mixprop_forward.3} parent=0 // pred_fallthru
    _
  // Predicated region
  $region10: #{mixprop_forward.3} parent=0 // pred_check
    _
  $region11: #{mixprop_forward.3} parent=0 // pred_check_branch
    %13 = sbr.rel (0) target = $region13
  $region12: #{mixprop_forward.3} parent=0 // pred_region
    _
  $region13: #{mixprop_forward.3} parent=0 // pred_fallthru
    _
  %v14 = vld [vmem:[%s1] sm:$0xff]
  %v15 = vld [vmem:[%s0] sm:$0xff]
  %v16 = vld [vmem:[%s0 + $0x8] sm:$0xff]
  %v17 = vld [vmem:[%s0 + $0x10] sm:$0xff]
  %v18 = vld [vmem:[%s0 + $0x18] sm:$0xff]
  %v19 = vld [vmem:[%s0 + $0x20] sm:$0xff]
  %v20 = vld [vmem:[%s0 + $0x28] sm:$0xff]
  %v21 = vld [vmem:[%s0 + $0x30] sm:$0xff]
  %v22 = vld [vmem:[%s0 + $0x38] sm:$0xff]
  %v23 = vld [vmem:[%s0 + $0x40] sm:$0xff]
  %v24 = vld [vmem:[%s0 + $0x48] sm:$0xff]
  %v25 = vld [vmem:[%s0 + $0x50] sm:$0xff]
  %v26 = vld [vmem:[%s0 + $0x58] sm:$0xff]
  %v27 = vld [vmem:[%s0 + $0x60] sm:$0xff]
  %v28 = vld [vmem:[%s0 + $0x68] sm:$0xff]
  %v29 = vld [vmem:[%s0 + $0x70] sm:$0xff]
  %v30 = vld [vmem:[%s0 + $0x78] sm:$0xff]
  %v31 = vld [vmem:[%s0 + $0x80] sm:$0xf]
  %v32 = vld [vmem:[%s0 + $0x88] sm:$0xf]
  %v33 = vld [vmem:[%s0 + $0x90] sm:$0xf]
  %v34 = vld [vmem:[%s0 + $0x98] sm:$0xf]
  %v35 = vld [vmem:[%s0 + $0xa0] sm:$0xf]
  %v36 = vld [vmem:[%s0 + $0xa8] sm:$0xf]
  %v37 = vld [vmem:[%s0 + $0xb0] sm:$0xf]
  %v38 = vld [vmem:[%s0 + $0xb8] sm:$0xf]
  %v39 = vld [vmem:[%s0 + $0xc0] sm:$0xf]
  %v40 = vld [vmem:[%s0 + $0xc8] sm:$0xf]
  %v41 = vld [vmem:[%s0 + $0xd0] sm:$0xf]
  %v42 = vld [vmem:[%s0 + $0xd8] sm:$0xf]
  %v43 = vld [vmem:[%s0 + $0xe0] sm:$0xf]
  %v44 = vld [vmem:[%s0 + $0xe8] sm:$0xf]
  %v45 = vld [vmem:[%s0 + $0xf0] sm:$0xf]
  %v46 = vld [vmem:[%s0 + $0xf8] sm:$0xf]
  %v47 = vld [vmem:[%s2] sm:$0xff]
  %49 = vset.pattern.permute.xlu0 0
  %50 = vperm.xlu0 %49, %v47
  %v51 = vpop.permute.xlu0 %50
  %vm53 = vcmask 97280
  %v55 = vsel %vm53, %v14, 0
  %vm57 = vcmask 1043456
  %v59 = vsel %vm57, %v31, 0
  %v62 = vsel %vm57, %v32, 0
  %v65 = vsel %vm57, %v33, 0
  %v68 = vsel %vm57, %v34, 0
  %v71 = vsel %vm57, %v35, 0
  %v74 = vsel %vm57, %v36, 0
  %v77 = vsel %vm57, %v37, 0
  %v80 = vsel %vm57, %v38, 0
  %v83 = vsel %vm57, %v39, 0
  %v86 = vsel %vm57, %v40, 0
  %v89 = vsel %vm57, %v41, 0
  %v92 = vsel %vm57, %v42, 0
  %v95 = vsel %vm57, %v43, 0
  %v98 = vsel %vm57, %v44, 0
  %v101 = vsel %vm57, %v45, 0
  %v104 = vsel %vm57, %v46, 0
  %106 = vmatprep.subr.mxu0 %v16
  %107 = vmatpush1.msra.mxu0 %v15
  %108 = vmatprep.subr.mxu0 %v62
  %109 = vmatpush1.msra.mxu0 %v59
  %110 = vmatprep.subr.mxu0 0.0
  %111 = vmatpush1.msra.mxu0 0.0
  %112 = vmatprep.subr.mxu0 0.0
  %113 = vmatpush1.msra.mxu0 0.0
  %114 = vmatprep.subr.mxu0 0.0
  %115 = vmatpush1.msra.mxu0 0.0
  %116 = vmatprep.subr.mxu0 0.0
  %117 = vmatpush1.msra.mxu0 0.0
  %118 = vmatprep.subr.mxu0 0.0
  %119 = vmatpush1.msra.mxu0 0.0
  %120 = vmatprep.subr.mxu0 0.0
  %121 = vmatpush1.msra.mxu0 0.0
  %122 = vmatprep.subr.mxu0 0.0
  %123 = vmatpush1.msra.mxu0 0.0
  %124 = vmatprep.subr.mxu0 0.0
  %125 = vmatpush1.msra.mxu0 0.0
  %126 = vmatprep.subr.mxu0 0.0
  %127 = vmatpush1.msra.mxu0 0.0
  %128 = vmatprep.subr.mxu0 0.0
  %129 = vmatpush1.msra.mxu0 0.0
  %130 = vmatprep.subr.mxu0 0.0
  %131 = vmatpush1.msra.mxu0 0.0
  %132 = vmatprep.subr.mxu0 0.0
  %133 = vmatpush1.msra.mxu0 0.0
  %134 = vmatprep.subr.mxu0 0.0
  %135 = vmatpush1.msra.mxu0 0.0
  %136 = vmatprep.subr.mxu0 0.0
  %137 = vmatpush1.msra.mxu0 0.0
  %138 = vmatprep.subr.mxu0 0.0
  %139 = vmatpush1.msra.mxu0 0.0
  %140 = vmatprep.subr.mxu0 0.0
  %141 = vmatpush1.msra.mxu0 0.0
  %142 = vmatprep.subr.mxu0 0.0
  %143 = vmatpush1.msra.mxu0 0.0
  %144 = vmatprep.subr.mxu0 0.0
  %145 = vmatpush1.msra.mxu0 0.0
  %146 = vmatprep.subr.mxu0 0.0
  %147 = vmatpush1.msra.mxu0 0.0
  %148 = vmatprep.subr.mxu0 0.0
  %149 = vmatpush1.msra.mxu0 0.0
  %150 = vmatprep.subr.mxu0 0.0
  %151 = vmatpush1.msra.mxu0 0.0
  %152 = vmatprep.subr.mxu0 0.0
  %153 = vmatpush1.msra.mxu0 0.0
  %154 = vmatprep.subr.mxu0 0.0
  %155 = vmatpush1.msra.mxu0 0.0
  %156 = vmatprep.subr.mxu0 0.0
  %157 = vmatpush1.msra.mxu0 0.0
  %158 = vmatprep.subr.mxu0 0.0
  %159 = vmatpush1.msra.mxu0 0.0
  %160 = vmatprep.subr.mxu0 0.0
  %161 = vmatpush1.msra.mxu0 0.0
  %162 = vmatprep.subr.mxu0 0.0
  %163 = vmatpush1.msra.mxu0 0.0
  %164 = vmatprep.subr.mxu0 0.0
  %165 = vmatpush1.msra.mxu0 0.0
  %166 = vmatprep.subr.mxu0 0.0
  %167 = vmatpush1.msra.mxu0 0.0
  %168 = vmatprep.subr.mxu0 0.0
  %169 = vmatpush1.msra.mxu0 0.0
  %170 = vmatprep.mubr.f32.mxu0 0.0
  %171 = vmatmul.mubr.f32.gmra.mrb[0].mxu0 %v55
  %v172 = vpop.f32.mrb[0].mxu0
  %v173 = vadd.f32 %v51, %v172
  %v174 = vpop.f32.mrb[0].mxu0
  %v175 = vadd.f32 %v51, %v174
  %176 = vdwg.mxu0
  %177 = vmatprep.subr.mxu0 %v18
  %178 = vmatpush1.msra.mxu0 %v17
  %179 = vmatprep.subr.mxu0 %v68
  %180 = vmatpush1.msra.mxu0 %v65
  %181 = vmatprep.subr.mxu0 0.0
  %182 = vmatpush1.msra.mxu0 0.0
  %183 = vmatprep.subr.mxu0 0.0
  %184 = vmatpush1.msra.mxu0 0.0
  %185 = vmatprep.subr.mxu0 0.0
  %186 = vmatpush1.msra.mxu0 0.0
  %187 = vmatprep.subr.mxu0 0.0
  %188 = vmatpush1.msra.mxu0 0.0
  %189 = vmatprep.subr.mxu0 0.0
  %190 = vmatpush1.msra.mxu0 0.0
  %191 = vmatprep.subr.mxu0 0.0
  %192 = vmatpush1.msra.mxu0 0.0
  %193 = vmatprep.subr.mxu0 0.0
  %194 = vmatpush1.msra.mxu0 0.0
  %195 = vmatprep.subr.mxu0 0.0
  %196 = vmatpush1.msra.mxu0 0.0
  %197 = vmatprep.subr.mxu0 0.0
  %198 = vmatpush1.msra.mxu0 0.0
  %199 = vmatprep.subr.mxu0 0.0
  %200 = vmatpush1.msra.mxu0 0.0
  %201 = vmatprep.subr.mxu0 0.0
  %202 = vmatpush1.msra.mxu0 0.0
  %203 = vmatprep.subr.mxu0 0.0
  %204 = vmatpush1.msra.mxu0 0.0
  %205 = vmatprep.subr.mxu0 0.0
  %206 = vmatpush1.msra.mxu0 0.0
  %207 = vmatprep.subr.mxu0 0.0
  %208 = vmatpush1.msra.mxu0 0.0
  %209 = vmatprep.subr.mxu0 0.0
  %210 = vmatpush1.msra.mxu0 0.0
  %211 = vmatprep.subr.mxu0 0.0
  %212 = vmatpush1.msra.mxu0 0.0
  %213 = vmatprep.subr.mxu0 0.0
  %214 = vmatpush1.msra.mxu0 0.0
  %215 = vmatprep.subr.mxu0 0.0
  %216 = vmatpush1.msra.mxu0 0.0
  %217 = vmatprep.subr.mxu0 0.0
  %218 = vmatpush1.msra.mxu0 0.0
  %219 = vmatprep.subr.mxu0 0.0
  %220 = vmatpush1.msra.mxu0 0.0
  %221 = vmatprep.subr.mxu0 0.0
  %222 = vmatpush1.msra.mxu0 0.0
  %223 = vmatprep.subr.mxu0 0.0
  %224 = vmatpush1.msra.mxu0 0.0
  %225 = vmatprep.subr.mxu0 0.0
  %226 = vmatpush1.msra.mxu0 0.0
  %227 = vmatprep.subr.mxu0 0.0
  %228 = vmatpush1.msra.mxu0 0.0
  %229 = vmatprep.subr.mxu0 0.0
  %230 = vmatpush1.msra.mxu0 0.0
  %231 = vmatprep.subr.mxu0 0.0
  %232 = vmatpush1.msra.mxu0 0.0
  %233 = vmatprep.subr.mxu0 0.0
  %234 = vmatpush1.msra.mxu0 0.0
  %235 = vmatprep.subr.mxu0 0.0
  %236 = vmatpush1.msra.mxu0 0.0
  %237 = vmatprep.subr.mxu0 0.0
  %238 = vmatpush1.msra.mxu0 0.0
  %239 = vmatprep.subr.mxu0 0.0
  %240 = vmatpush1.msra.mxu0 0.0
  %241 = vmatprep.mubr.f32.mxu0 0.0
  %242 = vmatmul.mubr.f32.gmra.mrb[0].mxu0 %v55
  %v243 = vpop.f32.mrb[0].mxu0
  %v244 = vadd.f32 %v51, %v243
  %v245 = vpop.f32.mrb[0].mxu0
  %v246 = vadd.f32 %v51, %v245
  %247 = vdwg.mxu0
  %248 = vmatprep.subr.mxu0 %v20
  %249 = vmatpush1.msra.mxu0 %v19
  %250 = vmatprep.subr.mxu0 %v74
  %251 = vmatpush1.msra.mxu0 %v71
  %252 = vmatprep.subr.mxu0 0.0
  %253 = vmatpush1.msra.mxu0 0.0
  %254 = vmatprep.subr.mxu0 0.0
  %255 = vmatpush1.msra.mxu0 0.0
  %256 = vmatprep.subr.mxu0 0.0
  %257 = vmatpush1.msra.mxu0 0.0
  %258 = vmatprep.subr.mxu0 0.0
  %259 = vmatpush1.msra.mxu0 0.0
  %260 = vmatprep.subr.mxu0 0.0
  %261 = vmatpush1.msra.mxu0 0.0
  %262 = vmatprep.subr.mxu0 0.0
  %263 = vmatpush1.msra.mxu0 0.0
  %264 = vmatprep.subr.mxu0 0.0
  %265 = vmatpush1.msra.mxu0 0.0
  %266 = vmatprep.subr.mxu0 0.0
  %267 = vmatpush1.msra.mxu0 0.0
  %268 = vmatprep.subr.mxu0 0.0
  %269 = vmatpush1.msra.mxu0 0.0
  %270 = vmatprep.subr.mxu0 0.0
  %271 = vmatpush1.msra.mxu0 0.0
  %272 = vmatprep.subr.mxu0 0.0
  %273 = vmatpush1.msra.mxu0 0.0
  %274 = vmatprep.subr.mxu0 0.0
  %275 = vmatpush1.msra.mxu0 0.0
  %276 = vmatprep.subr.mxu0 0.0
  %277 = vmatpush1.msra.mxu0 0.0
  %278 = vmatprep.subr.mxu0 0.0
  %279 = vmatpush1.msra.mxu0 0.0
  %280 = vmatprep.subr.mxu0 0.0
  %281 = vmatpush1.msra.mxu0 0.0
  %282 = vmatprep.subr.mxu0 0.0
  %283 = vmatpush1.msra.mxu0 0.0
  %284 = vmatprep.subr.mxu0 0.0
  %285 = vmatpush1.msra.mxu0 0.0
  %286 = vmatprep.subr.mxu0 0.0
  %287 = vmatpush1.msra.mxu0 0.0
  %288 = vmatprep.subr.mxu0 0.0
  %289 = vmatpush1.msra.mxu0 0.0
  %290 = vmatprep.subr.mxu0 0.0
  %291 = vmatpush1.msra.mxu0 0.0
  %292 = vmatprep.subr.mxu0 0.0
  %293 = vmatpush1.msra.mxu0 0.0
  %294 = vmatprep.subr.mxu0 0.0
  %295 = vmatpush1.msra.mxu0 0.0
  %296 = vmatprep.subr.mxu0 0.0
  %297 = vmatpush1.msra.mxu0 0.0
  %298 = vmatprep.subr.mxu0 0.0
  %299 = vmatpush1.msra.mxu0 0.0
  %300 = vmatprep.subr.mxu0 0.0
  %301 = vmatpush1.msra.mxu0 0.0
  %302 = vmatprep.subr.mxu0 0.0
  %303 = vmatpush1.msra.mxu0 0.0
  %304 = vmatprep.subr.mxu0 0.0
  %305 = vmatpush1.msra.mxu0 0.0
  %306 = vmatprep.subr.mxu0 0.0
  %307 = vmatpush1.msra.mxu0 0.0
  %308 = vmatprep.subr.mxu0 0.0
  %309 = vmatpush1.msra.mxu0 0.0
  %310 = vmatprep.subr.mxu0 0.0
  %311 = vmatpush1.msra.mxu0 0.0
  %312 = vmatprep.mubr.f32.mxu0 0.0
  %313 = vmatmul.mubr.f32.gmra.mrb[0].mxu0 %v55
  %v314 = vpop.f32.mrb[0].mxu0
  %v315 = vadd.f32 %v51, %v314
  %v316 = vpop.f32.mrb[0].mxu0
  %v317 = vadd.f32 %v51, %v316
  %318 = vdwg.mxu0
  %319 = vmatprep.subr.mxu0 %v22
  %320 = vmatpush1.msra.mxu0 %v21
  %321 = vmatprep.subr.mxu0 %v80
  %322 = vmatpush1.msra.mxu0 %v77
  %323 = vmatprep.subr.mxu0 0.0
  %324 = vmatpush1.msra.mxu0 0.0
  %325 = vmatprep.subr.mxu0 0.0
  %326 = vmatpush1.msra.mxu0 0.0
  %327 = vmatprep.subr.mxu0 0.0
  %328 = vmatpush1.msra.mxu0 0.0
  %329 = vmatprep.subr.mxu0 0.0
  %330 = vmatpush1.msra.mxu0 0.0
  %331 = vmatprep.subr.mxu0 0.0
  %332 = vmatpush1.msra.mxu0 0.0
  %333 = vmatprep.subr.mxu0 0.0
  %334 = vmatpush1.msra.mxu0 0.0
  %335 = vmatprep.subr.mxu0 0.0
  %336 = vmatpush1.msra.mxu0 0.0
  %337 = vmatprep.subr.mxu0 0.0
  %338 = vmatpush1.msra.mxu0 0.0
  %339 = vmatprep.subr.mxu0 0.0
  %340 = vmatpush1.msra.mxu0 0.0
  %341 = vmatprep.subr.mxu0 0.0
  %342 = vmatpush1.msra.mxu0 0.0
  %343 = vmatprep.subr.mxu0 0.0
  %344 = vmatpush1.msra.mxu0 0.0
  %345 = vmatprep.subr.mxu0 0.0
  %346 = vmatpush1.msra.mxu0 0.0
  %347 = vmatprep.subr.mxu0 0.0
  %348 = vmatpush1.msra.mxu0 0.0
  %349 = vmatprep.subr.mxu0 0.0
  %350 = vmatpush1.msra.mxu0 0.0
  %351 = vmatprep.subr.mxu0 0.0
  %352 = vmatpush1.msra.mxu0 0.0
  %353 = vmatprep.subr.mxu0 0.0
  %354 = vmatpush1.msra.mxu0 0.0
  %355 = vmatprep.subr.mxu0 0.0
  %356 = vmatpush1.msra.mxu0 0.0
  %357 = vmatprep.subr.mxu0 0.0
  %358 = vmatpush1.msra.mxu0 0.0
  %359 = vmatprep.subr.mxu0 0.0
  %360 = vmatpush1.msra.mxu0 0.0
  %361 = vmatprep.subr.mxu0 0.0
  %362 = vmatpush1.msra.mxu0 0.0
  %363 = vmatprep.subr.mxu0 0.0
  %364 = vmatpush1.msra.mxu0 0.0
  %365 = vmatprep.subr.mxu0 0.0
  %366 = vmatpush1.msra.mxu0 0.0
  %367 = vmatprep.subr.mxu0 0.0
  %368 = vmatpush1.msra.mxu0 0.0
  %369 = vmatprep.subr.mxu0 0.0
  %370 = vmatpush1.msra.mxu0 0.0
  %371 = vmatprep.subr.mxu0 0.0
  %372 = vmatpush1.msra.mxu0 0.0
  %373 = vmatprep.subr.mxu0 0.0
  %374 = vmatpush1.msra.mxu0 0.0
  %375 = vmatprep.subr.mxu0 0.0
  %376 = vmatpush1.msra.mxu0 0.0
  %377 = vmatprep.subr.mxu0 0.0
  %378 = vmatpush1.msra.mxu0 0.0
  %379 = vmatprep.subr.mxu0 0.0
  %380 = vmatpush1.msra.mxu0 0.0
  %381 = vmatprep.subr.mxu0 0.0
  %382 = vmatpush1.msra.mxu0 0.0
  %383 = vmatprep.mubr.f32.mxu0 0.0
  %384 = vmatmul.mubr.f32.gmra.mrb[0].mxu0 %v55
  %v385 = vpop.f32.mrb[0].mxu0
  %v386 = vadd.f32 %v51, %v385
  %v387 = vpop.f32.mrb[0].mxu0
  %v388 = vadd.f32 %v51, %v387
  %389 = vdwg.mxu0
  %390 = vmatprep.subr.mxu0 %v24
  %391 = vmatpush1.msra.mxu0 %v23
  %392 = vmatprep.subr.mxu0 %v86
  %393 = vmatpush1.msra.mxu0 %v83
  %394 = vmatprep.subr.mxu0 0.0
  %395 = vmatpush1.msra.mxu0 0.0
  %396 = vmatprep.subr.mxu0 0.0
  %397 = vmatpush1.msra.mxu0 0.0
  %398 = vmatprep.subr.mxu0 0.0
  %399 = vmatpush1.msra.mxu0 0.0
  %400 = vmatprep.subr.mxu0 0.0
  %401 = vmatpush1.msra.mxu0 0.0
  %402 = vmatprep.subr.mxu0 0.0
  %403 = vmatpush1.msra.mxu0 0.0
  %404 = vmatprep.subr.mxu0 0.0
  %405 = vmatpush1.msra.mxu0 0.0
  %406 = vmatprep.subr.mxu0 0.0
  %407 = vmatpush1.msra.mxu0 0.0
  %408 = vmatprep.subr.mxu0 0.0
  %409 = vmatpush1.msra.mxu0 0.0
  %410 = vmatprep.subr.mxu0 0.0
  %411 = vmatpush1.msra.mxu0 0.0
  %412 = vmatprep.subr.mxu0 0.0
  %413 = vmatpush1.msra.mxu0 0.0
  %414 = vmatprep.subr.mxu0 0.0
  %415 = vmatpush1.msra.mxu0 0.0
  %416 = vmatprep.subr.mxu0 0.0
  %417 = vmatpush1.msra.mxu0 0.0
  %418 = vmatprep.subr.mxu0 0.0
  %419 = vmatpush1.msra.mxu0 0.0
  %420 = vmatprep.subr.mxu0 0.0
  %421 = vmatpush1.msra.mxu0 0.0
  %422 = vmatprep.subr.mxu0 0.0
  %423 = vmatpush1.msra.mxu0 0.0
  %424 = vmatprep.subr.mxu0 0.0
  %425 = vmatpush1.msra.mxu0 0.0
  %426 = vmatprep.subr.mxu0 0.0
  %427 = vmatpush1.msra.mxu0 0.0
  %428 = vmatprep.subr.mxu0 0.0
  %429 = vmatpush1.msra.mxu0 0.0
  %430 = vmatprep.subr.mxu0 0.0
  %431 = vmatpush1.msra.mxu0 0.0
  %432 = vmatprep.subr.mxu0 0.0
  %433 = vmatpush1.msra.mxu0 0.0
  %434 = vmatprep.subr.mxu0 0.0
  %435 = vmatpush1.msra.mxu0 0.0
  %436 = vmatprep.subr.mxu0 0.0
  %437 = vmatpush1.msra.mxu0 0.0
  %438 = vmatprep.subr.mxu0 0.0
  %439 = vmatpush1.msra.mxu0 0.0
  %440 = vmatprep.subr.mxu0 0.0
  %441 = vmatpush1.msra.mxu0 0.0
  %442 = vmatprep.subr.mxu0 0.0
  %443 = vmatpush1.msra.mxu0 0.0
  %444 = vmatprep.subr.mxu0 0.0
  %445 = vmatpush1.msra.mxu0 0.0
  %446 = vmatprep.subr.mxu0 0.0
  %447 = vmatpush1.msra.mxu0 0.0
  %448 = vmatprep.subr.mxu0 0.0
  %449 = vmatpush1.msra.mxu0 0.0
  %450 = vmatprep.subr.mxu0 0.0
  %451 = vmatpush1.msra.mxu0 0.0
  %452 = vmatprep.subr.mxu0 0.0
  %453 = vmatpush1.msra.mxu0 0.0
  %454 = vmatprep.mubr.f32.mxu0 0.0
  %455 = vmatmul.mubr.f32.gmra.mrb[0].mxu0 %v55
  %v456 = vpop.f32.mrb[0].mxu0
  %v457 = vadd.f32 %v51, %v456
  %v458 = vpop.f32.mrb[0].mxu0
  %v459 = vadd.f32 %v51, %v458
  %460 = vdwg.mxu0
  %461 = vmatprep.subr.mxu0 %v26
  %462 = vmatpush1.msra.mxu0 %v25
  %463 = vmatprep.subr.mxu0 %v92
  %464 = vmatpush1.msra.mxu0 %v89
  %465 = vmatprep.subr.mxu0 0.0
  %466 = vmatpush1.msra.mxu0 0.0
  %467 = vmatprep.subr.mxu0 0.0
  %468 = vmatpush1.msra.mxu0 0.0
  %469 = vmatprep.subr.mxu0 0.0
  %470 = vmatpush1.msra.mxu0 0.0
  %471 = vmatprep.subr.mxu0 0.0
  %472 = vmatpush1.msra.mxu0 0.0
  %473 = vmatprep.subr.mxu0 0.0
  %474 = vmatpush1.msra.mxu0 0.0
  %475 = vmatprep.subr.mxu0 0.0
  %476 = vmatpush1.msra.mxu0 0.0
  %477 = vmatprep.subr.mxu0 0.0
  %478 = vmatpush1.msra.mxu0 0.0
  %479 = vmatprep.subr.mxu0 0.0
  %480 = vmatpush1.msra.mxu0 0.0
  %481 = vmatprep.subr.mxu0 0.0
  %482 = vmatpush1.msra.mxu0 0.0
  %483 = vmatprep.subr.mxu0 0.0
  %484 = vmatpush1.msra.mxu0 0.0
  %485 = vmatprep.subr.mxu0 0.0
  %486 = vmatpush1.msra.mxu0 0.0
  %487 = vmatprep.subr.mxu0 0.0
  %488 = vmatpush1.msra.mxu0 0.0
  %489 = vmatprep.subr.mxu0 0.0
  %490 = vmatpush1.msra.mxu0 0.0
  %491 = vmatprep.subr.mxu0 0.0
  %492 = vmatpush1.msra.mxu0 0.0
  %493 = vmatprep.subr.mxu0 0.0
  %494 = vmatpush1.msra.mxu0 0.0
  %495 = vmatprep.subr.mxu0 0.0
  %496 = vmatpush1.msra.mxu0 0.0
  %497 = vmatprep.subr.mxu0 0.0
  %498 = vmatpush1.msra.mxu0 0.0
  %499 = vmatprep.subr.mxu0 0.0
  %500 = vmatpush1.msra.mxu0 0.0
  %501 = vmatprep.subr.mxu0 0.0
  %502 = vmatpush1.msra.mxu0 0.0
  %503 = vmatprep.subr.mxu0 0.0
  %504 = vmatpush1.msra.mxu0 0.0
  %505 = vmatprep.subr.mxu0 0.0
  %506 = vmatpush1.msra.mxu0 0.0
  %507 = vmatprep.subr.mxu0 0.0
  %508 = vmatpush1.msra.mxu0 0.0
  %509 = vmatprep.subr.mxu0 0.0
  %510 = vmatpush1.msra.mxu0 0.0
  %511 = vmatprep.subr.mxu0 0.0
  %512 = vmatpush1.msra.mxu0 0.0
  %513 = vmatprep.subr.mxu0 0.0
  %514 = vmatpush1.msra.mxu0 0.0
  %515 = vmatprep.subr.mxu0 0.0
  %516 = vmatpush1.msra.mxu0 0.0
  %517 = vmatprep.subr.mxu0 0.0
  %518 = vmatpush1.msra.mxu0 0.0
  %519 = vmatprep.subr.mxu0 0.0
  %520 = vmatpush1.msra.mxu0 0.0
  %521 = vmatprep.subr.mxu0 0.0
  %522 = vmatpush1.msra.mxu0 0.0
  %523 = vmatprep.subr.mxu0 0.0
  %524 = vmatpush1.msra.mxu0 0.0
  %525 = vmatprep.mubr.f32.mxu0 0.0
  %526 = vmatmul.mubr.f32.gmra.mrb[0].mxu0 %v55
  %v527 = vpop.f32.mrb[0].mxu0
  %v528 = vadd.f32 %v51, %v527
  %v529 = vpop.f32.mrb[0].mxu0
  %v530 = vadd.f32 %v51, %v529
  %531 = vdwg.mxu0
  %532 = vmatprep.subr.mxu0 %v28
  %533 = vmatpush1.msra.mxu0 %v27
  %534 = vmatprep.subr.mxu0 %v98
  %535 = vmatpush1.msra.mxu0 %v95
  %536 = vmatprep.subr.mxu0 0.0
  %537 = vmatpush1.msra.mxu0 0.0
  %538 = vmatprep.subr.mxu0 0.0
  %539 = vmatpush1.msra.mxu0 0.0
  %540 = vmatprep.subr.mxu0 0.0
  %541 = vmatpush1.msra.mxu0 0.0
  %542 = vmatprep.subr.mxu0 0.0
  %543 = vmatpush1.msra.mxu0 0.0
  %544 = vmatprep.subr.mxu0 0.0
  %545 = vmatpush1.msra.mxu0 0.0
  %546 = vmatprep.subr.mxu0 0.0
  %547 = vmatpush1.msra.mxu0 0.0
  %548 = vmatprep.subr.mxu0 0.0
  %549 = vmatpush1.msra.mxu0 0.0
  %550 = vmatprep.subr.mxu0 0.0
  %551 = vmatpush1.msra.mxu0 0.0
  %552 = vmatprep.subr.mxu0 0.0
  %553 = vmatpush1.msra.mxu0 0.0
  %554 = vmatprep.subr.mxu0 0.0
  %555 = vmatpush1.msra.mxu0 0.0
  %556 = vmatprep.subr.mxu0 0.0
  %557 = vmatpush1.msra.mxu0 0.0
  %558 = vmatprep.subr.mxu0 0.0
  %559 = vmatpush1.msra.mxu0 0.0
  %560 = vmatprep.subr.mxu0 0.0
  %561 = vmatpush1.msra.mxu0 0.0
  %562 = vmatprep.subr.mxu0 0.0
  %563 = vmatpush1.msra.mxu0 0.0
  %564 = vmatprep.subr.mxu0 0.0
  %565 = vmatpush1.msra.mxu0 0.0
  %566 = vmatprep.subr.mxu0 0.0
  %567 = vmatpush1.msra.mxu0 0.0
  %568 = vmatprep.subr.mxu0 0.0
  %569 = vmatpush1.msra.mxu0 0.0
  %570 = vmatprep.subr.mxu0 0.0
  %571 = vmatpush1.msra.mxu0 0.0
  %572 = vmatprep.subr.mxu0 0.0
  %573 = vmatpush1.msra.mxu0 0.0
  %574 = vmatprep.subr.mxu0 0.0
  %575 = vmatpush1.msra.mxu0 0.0
  %576 = vmatprep.subr.mxu0 0.0
  %577 = vmatpush1.msra.mxu0 0.0
  %578 = vmatprep.subr.mxu0 0.0
  %579 = vmatpush1.msra.mxu0 0.0
  %580 = vmatprep.subr.mxu0 0.0
  %581 = vmatpush1.msra.mxu0 0.0
  %582 = vmatprep.subr.mxu0 0.0
  %583 = vmatpush1.msra.mxu0 0.0
  %584 = vmatprep.subr.mxu0 0.0
  %585 = vmatpush1.msra.mxu0 0.0
  %586 = vmatprep.subr.mxu0 0.0
  %587 = vmatpush1.msra.mxu0 0.0
  %588 = vmatprep.subr.mxu0 0.0
  %589 = vmatpush1.msra.mxu0 0.0
  %590 = vmatprep.subr.mxu0 0.0
  %591 = vmatpush1.msra.mxu0 0.0
  %592 = vmatprep.subr.mxu0 0.0
  %593 = vmatpush1.msra.mxu0 0.0
  %594 = vmatprep.subr.mxu0 0.0
  %595 = vmatpush1.msra.mxu0 0.0
  %596 = vmatprep.mubr.f32.mxu0 0.0
  %597 = vmatmul.mubr.f32.gmra.mrb[0].mxu0 %v55
  %v598 = vpop.f32.mrb[0].mxu0
  %v599 = vadd.f32 %v51, %v598
  %v600 = vpop.f32.mrb[0].mxu0
  %v601 = vadd.f32 %v51, %v600
  %602 = vdwg.mxu0
  %603 = vmatprep.subr.mxu0 %v30
  %604 = vmatpush1.msra.mxu0 %v29
  %605 = vmatprep.subr.mxu0 %v104
  %606 = vmatpush1.msra.mxu0 %v101
  %607 = vmatprep.subr.mxu0 0.0
  %608 = vmatpush1.msra.mxu0 0.0
  %609 = vmatprep.subr.mxu0 0.0
  %610 = vmatpush1.msra.mxu0 0.0
  %611 = vmatprep.subr.mxu0 0.0
  %612 = vmatpush1.msra.mxu0 0.0
  %613 = vmatprep.subr.mxu0 0.0
  %614 = vmatpush1.msra.mxu0 0.0
  %615 = vmatprep.subr.mxu0 0.0
  %616 = vmatpush1.msra.mxu0 0.0
  %617 = vmatprep.subr.mxu0 0.0
  %618 = vmatpush1.msra.mxu0 0.0
  %619 = vmatprep.subr.mxu0 0.0
  %620 = vmatpush1.msra.mxu0 0.0
  %621 = vmatprep.subr.mxu0 0.0
  %622 = vmatpush1.msra.mxu0 0.0
  %623 = vmatprep.subr.mxu0 0.0
  %624 = vmatpush1.msra.mxu0 0.0
  %625 = vmatprep.subr.mxu0 0.0
  %626 = vmatpush1.msra.mxu0 0.0
  %627 = vmatprep.subr.mxu0 0.0
  %628 = vmatpush1.msra.mxu0 0.0
  %629 = vmatprep.subr.mxu0 0.0
  %630 = vmatpush1.msra.mxu0 0.0
  %631 = vmatprep.subr.mxu0 0.0
  %632 = vmatpush1.msra.mxu0 0.0
  %633 = vmatprep.subr.mxu0 0.0
  %634 = vmatpush1.msra.mxu0 0.0
  %635 = vmatprep.subr.mxu0 0.0
  %636 = vmatpush1.msra.mxu0 0.0
  %637 = vmatprep.subr.mxu0 0.0
  %638 = vmatpush1.msra.mxu0 0.0
  %639 = vmatprep.subr.mxu0 0.0
  %640 = vmatpush1.msra.mxu0 0.0
  %641 = vmatprep.subr.mxu0 0.0
  %642 = vmatpush1.msra.mxu0 0.0
  %643 = vmatprep.subr.mxu0 0.0
  %644 = vmatpush1.msra.mxu0 0.0
  %645 = vmatprep.subr.mxu0 0.0
  %646 = vmatpush1.msra.mxu0 0.0
  %647 = vmatprep.subr.mxu0 0.0
  %648 = vmatpush1.msra.mxu0 0.0
  %649 = vmatprep.subr.mxu0 0.0
  %650 = vmatpush1.msra.mxu0 0.0
  %651 = vmatprep.subr.mxu0 0.0
  %652 = vmatpush1.msra.mxu0 0.0
  %653 = vmatprep.subr.mxu0 0.0
  %654 = vmatpush1.msra.mxu0 0.0
  %655 = vmatprep.subr.mxu0 0.0
  %656 = vmatpush1.msra.mxu0 0.0
  %657 = vmatprep.subr.mxu0 0.0
  %658 = vmatpush1.msra.mxu0 0.0
  %659 = vmatprep.subr.mxu0 0.0
  %660 = vmatpush1.msra.mxu0 0.0
  %661 = vmatprep.subr.mxu0 0.0
  %662 = vmatpush1.msra.mxu0 0.0
  %663 = vmatprep.subr.mxu0 0.0
  %664 = vmatpush1.msra.mxu0 0.0
  %665 = vmatprep.subr.mxu0 0.0
  %666 = vmatpush1.msra.mxu0 0.0
  %667 = vmatprep.mubr.f32.mxu0 0.0
  %668 = vmatmul.mubr.f32.gmra.mrb[0].mxu0 %v55
  %v669 = vpop.f32.mrb[0].mxu0
  %v670 = vadd.f32 %v51, %v669
  %v671 = vpop.f32.mrb[0].mxu0
  %v672 = vadd.f32 %v51, %v671
  %673 = vdwg.mxu0
  %674 = vst [vmem:[%s3] sm:$0xff] %v173
  %675 = vst [vmem:[%s3 + $0x8] sm:$0xff] %v175
  %676 = vst [vmem:[%s3 + $0x10] sm:$0xff] %v244
  %677 = vst [vmem:[%s3 + $0x18] sm:$0xff] %v246
  %678 = vst [vmem:[%s3 + $0x20] sm:$0xff] %v315
  %679 = vst [vmem:[%s3 + $0x28] sm:$0xff] %v317
  %680 = vst [vmem:[%s3 + $0x30] sm:$0xff] %v386
  %681 = vst [vmem:[%s3 + $0x38] sm:$0xff] %v388
  %682 = vst [vmem:[%s3 + $0x40] sm:$0xff] %v457
  %683 = vst [vmem:[%s3 + $0x48] sm:$0xff] %v459
  %684 = vst [vmem:[%s3 + $0x50] sm:$0xff] %v528
  %685 = vst [vmem:[%s3 + $0x58] sm:$0xff] %v530
  %686 = vst [vmem:[%s3 + $0x60] sm:$0xff] %v599
  %687 = vst [vmem:[%s3 + $0x68] sm:$0xff] %v601
  %688 = vst [vmem:[%s3 + $0x70] sm:$0xff] %v670
  %689 = vst [vmem:[%s3 + $0x78] sm:$0xff] %v672
  // Predicated region
  $region14: #{mixprop_forward.3} parent=0 // pred_check
    _
  $region15: #{mixprop_forward.3} parent=0 // pred_check_branch
    %691 = sbr.rel (0) target = $region17
  $region16: #{mixprop_forward.3} parent=0 // pred_region
    _
  $region17: #{mixprop_forward.3} parent=0 // pred_fallthru
    _
  // Predicated region
  $region18: #{mixprop_forward.3} parent=0 // pred_check
    _
  $region19: #{mixprop_forward.3} parent=0 // pred_check_branch
    %693 = sbr.rel (0) target = $region21
  $region20: #{mixprop_forward.3} parent=0 // pred_region
    _
  $region21: #{mixprop_forward.3} parent=0 // pred_fallthru
    _

// kernel: mixprop_forward.2
$region0: #{mixprop_forward.2}
  #allocation0 [shape = 'u32[]', space=smem, size = 0x4, offset = 0x4, fixed_abs, tag = 'smem constant byte address 0x4 - core index']
  #allocation1 [shape = 'u32[144,128]{1,0:T(1,128)}', space=vmem, size = 0x12000, scoped, tag = 'internal scratch']
  %s0 = inlined_call_operand.vmem [shape: f32[16,16], index: 0, kind: input, shape index: {}]
  %s1 = inlined_call_operand.vmem [shape: f32[4,16,128], index: 1, kind: input, shape index: {}]
  %s2 = inlined_call_operand.vmem [shape: f32[12,16,128], index: 2, kind: output, shape index: {}]
  %s3 = sld [smem:[#allocation0]]
  $region18: #{mixprop_forward.2} parent=0
    _
  %s5 = ssub.s32 1, %s3
  %s6 = scalar_select 0, %s5, %s3
  // Predicated region
  $region2: #{mixprop_forward.2} parent=0 // pred_check
    _
  $region3: #{mixprop_forward.2} parent=0 // pred_check_branch
    %8 = sbr.rel (0) target = $region5
  $region4: #{mixprop_forward.2} parent=0 // pred_region
    _
  $region5: #{mixprop_forward.2} parent=0 // pred_fallthru
    _
  // Predicated region
  $region6: #{mixprop_forward.2} parent=0 // pred_check
    _
  $region7: #{mixprop_forward.2} parent=0 // pred_check_branch
    %10 = sbr.rel (0) target = $region9
  $region8: #{mixprop_forward.2} parent=0 // pred_region
    _
  $region9: #{mixprop_forward.2} parent=0 // pred_fallthru
    _
  %v11 = vld [vmem:[%s0] sm:$0xff]
  %v12 = vld [vmem:[%s0 + $0x8] sm:$0xff]
  %v13 = vld [vmem:[%s1] sm:$0xff]
  %v14 = vld [vmem:[%s1 + $0x8] sm:$0xff]
  %v15 = vmul.f32 %v13, 0.05
  %v16 = vmul.f32 %v14, 0.05
  %17 = vst [vmem:[%s2] sm:$0xff] %v13
  %18 = vst [vmem:[%s2 + $0x8] sm:$0xff] %v14
  %s19 = scalar_lea.vmem %s1, 16
  %v20 = vld [vmem:[%s19] sm:$0xff]
  %v21 = vld [vmem:[%s19 + $0x8] sm:$0xff]
  %v22 = vmul.f32 %v20, 0.05
  %v23 = vmul.f32 %v21, 0.05
  %s24 = scalar_lea.vmem %s2, 16
  %25 = vst [vmem:[%s24] sm:$0xff] %v20
  %26 = vst [vmem:[%s24 + $0x8] sm:$0xff] %v21
  %s27 = scalar_lea.vmem %s1, 32
  %v28 = vld [vmem:[%s27] sm:$0xff]
  %v29 = vld [vmem:[%s27 + $0x8] sm:$0xff]
  %v30 = vmul.f32 %v28, 0.05
  %v31 = vmul.f32 %v29, 0.05
  %s32 = scalar_lea.vmem %s2, 32
  %33 = vst [vmem:[%s32] sm:$0xff] %v28
  %34 = vst [vmem:[%s32 + $0x8] sm:$0xff] %v29
  %s35 = scalar_lea.vmem %s1, 48
  %v36 = vld [vmem:[%s35] sm:$0xff]
  %v37 = vld [vmem:[%s35 + $0x8] sm:$0xff]
  %v38 = vmul.f32 %v36, 0.05
  %v39 = vmul.f32 %v37, 0.05
  %s40 = scalar_lea.vmem %s2, 48
  %41 = vst [vmem:[%s40] sm:$0xff] %v36
  %42 = vst [vmem:[%s40 + $0x8] sm:$0xff] %v37
  %vm43 = vcmask 130048
  %v45 = vsel %vm43, %v11, 0
  %v48 = vsel %vm43, %v12, 0
  %50 = vmatprep.subr.mxu0 0.0
  %51 = vmatpush1.msra.mxu0 %v13
  %52 = vmatprep.subr.mxu0 0.0
  %53 = vmatpush1.msra.mxu0 %v14
  %54 = vmatprep.subr.mxu0 0.0
  %55 = vmatpush1.msra.mxu0 0.0
  %56 = vmatprep.subr.mxu0 0.0
  %57 = vmatpush1.msra.mxu0 0.0
  %58 = vmatprep.subr.mxu0 0.0
  %59 = vmatpush1.msra.mxu0 0.0
  %60 = vmatprep.subr.mxu0 0.0
  %61 = vmatpush1.msra.mxu0 0.0
  %62 = vmatprep.subr.mxu0 0.0
  %63 = vmatpush1.msra.mxu0 0.0
  %64 = vmatprep.subr.mxu0 0.0
  %65 = vmatpush1.msra.mxu0 0.0
  %66 = vmatprep.subr.mxu0 0.0
  %67 = vmatpush1.msra.mxu0 0.0
  %68 = vmatprep.subr.mxu0 0.0
  %69 = vmatpush1.msra.mxu0 0.0
  %70 = vmatprep.subr.mxu0 0.0
  %71 = vmatpush1.msra.mxu0 0.0
  %72 = vmatprep.subr.mxu0 0.0
  %73 = vmatpush1.msra.mxu0 0.0
  %74 = vmatprep.subr.mxu0 0.0
  %75 = vmatpush1.msra.mxu0 0.0
  %76 = vmatprep.subr.mxu0 0.0
  %77 = vmatpush1.msra.mxu0 0.0
  %78 = vmatprep.subr.mxu0 0.0
  %79 = vmatpush1.msra.mxu0 0.0
  %80 = vmatprep.subr.mxu0 0.0
  %81 = vmatpush1.msra.mxu0 0.0
  %82 = vmatprep.subr.mxu0 0.0
  %83 = vmatpush1.msra.mxu0 0.0
  %84 = vmatprep.subr.mxu0 0.0
  %85 = vmatpush1.msra.mxu0 0.0
  %86 = vmatprep.subr.mxu0 0.0
  %87 = vmatpush1.msra.mxu0 0.0
  %88 = vmatprep.subr.mxu0 0.0
  %89 = vmatpush1.msra.mxu0 0.0
  %90 = vmatprep.subr.mxu0 0.0
  %91 = vmatpush1.msra.mxu0 0.0
  %92 = vmatprep.subr.mxu0 0.0
  %93 = vmatpush1.msra.mxu0 0.0
  %94 = vmatprep.subr.mxu0 0.0
  %95 = vmatpush1.msra.mxu0 0.0
  %96 = vmatprep.subr.mxu0 0.0
  %97 = vmatpush1.msra.mxu0 0.0
  %98 = vmatprep.subr.mxu0 0.0
  %99 = vmatpush1.msra.mxu0 0.0
  %100 = vmatprep.subr.mxu0 0.0
  %101 = vmatpush1.msra.mxu0 0.0
  %102 = vmatprep.subr.mxu0 0.0
  %103 = vmatpush1.msra.mxu0 0.0
  %104 = vmatprep.subr.mxu0 0.0
  %105 = vmatpush1.msra.mxu0 0.0
  %106 = vmatprep.subr.mxu0 0.0
  %107 = vmatpush1.msra.mxu0 0.0
  %108 = vmatprep.subr.mxu0 0.0
  %109 = vmatpush1.msra.mxu0 0.0
  %110 = vmatprep.subr.mxu0 0.0
  %111 = vmatpush1.msra.mxu0 0.0
  %112 = vmatprep.subr.mxu0 0.0
  %113 = vmatpush1.msra.mxu0 0.0
  %114 = vmatprep.mubr.f32.mxu0 0.0
  %115 = vmatmul.mubr.f32.gmra.mrb[0].mxu0 %v45
  %v116 = vpop.f32.mrb[0].mxu0
  %v117 = vadd.f32 0.0, %v116
  %v118 = vpop.f32.mrb[0].mxu0
  %119 = vmatprep.mubr.f32.mxu0 0.0
  %120 = vmatmul.mubr.f32.gmra.mrb[0].mxu0 %v48
  %v121 = vpop.f32.mrb[0].mxu0
  %v122 = vadd.f32 0.0, %v121
  %v123 = vpop.f32.mrb[0].mxu0
  %124 = vdwg.mxu0
  %v125 = vmul.f32 %v117, 0.95
  %v126 = vmul.f32 %v122, 0.95
  %v127 = vadd.f32 %v15, %v125
  %v128 = vadd.f32 %v16, %v126
  %s129 = scalar_lea.vmem %s2, 64
  %130 = vst [vmem:[%s129] sm:$0xff] %v127
  %131 = vst [vmem:[%s129 + $0x8] sm:$0xff] %v128
  %132 = vmatprep.subr.mxu0 0.0
  %133 = vmatpush1.msra.mxu0 %v20
  %134 = vmatprep.subr.mxu0 0.0
  %135 = vmatpush1.msra.mxu0 %v21
  %136 = vmatprep.subr.mxu0 0.0
  %137 = vmatpush1.msra.mxu0 0.0
  %138 = vmatprep.subr.mxu0 0.0
  %139 = vmatpush1.msra.mxu0 0.0
  %140 = vmatprep.subr.mxu0 0.0
  %141 = vmatpush1.msra.mxu0 0.0
  %142 = vmatprep.subr.mxu0 0.0
  %143 = vmatpush1.msra.mxu0 0.0
  %144 = vmatprep.subr.mxu0 0.0
  %145 = vmatpush1.msra.mxu0 0.0
  %146 = vmatprep.subr.mxu0 0.0
  %147 = vmatpush1.msra.mxu0 0.0
  %148 = vmatprep.subr.mxu0 0.0
  %149 = vmatpush1.msra.mxu0 0.0
  %150 = vmatprep.subr.mxu0 0.0
  %151 = vmatpush1.msra.mxu0 0.0
  %152 = vmatprep.subr.mxu0 0.0
  %153 = vmatpush1.msra.mxu0 0.0
  %154 = vmatprep.subr.mxu0 0.0
  %155 = vmatpush1.msra.mxu0 0.0
  %156 = vmatprep.subr.mxu0 0.0
  %157 = vmatpush1.msra.mxu0 0.0
  %158 = vmatprep.subr.mxu0 0.0
  %159 = vmatpush1.msra.mxu0 0.0
  %160 = vmatprep.subr.mxu0 0.0
  %161 = vmatpush1.msra.mxu0 0.0
  %162 = vmatprep.subr.mxu0 0.0
  %163 = vmatpush1.msra.mxu0 0.0
  %164 = vmatprep.subr.mxu0 0.0
  %165 = vmatpush1.msra.mxu0 0.0
  %166 = vmatprep.subr.mxu0 0.0
  %167 = vmatpush1.msra.mxu0 0.0
  %168 = vmatprep.subr.mxu0 0.0
  %169 = vmatpush1.msra.mxu0 0.0
  %170 = vmatprep.subr.mxu0 0.0
  %171 = vmatpush1.msra.mxu0 0.0
  %172 = vmatprep.subr.mxu0 0.0
  %173 = vmatpush1.msra.mxu0 0.0
  %174 = vmatprep.subr.mxu0 0.0
  %175 = vmatpush1.msra.mxu0 0.0
  %176 = vmatprep.subr.mxu0 0.0
  %177 = vmatpush1.msra.mxu0 0.0
  %178 = vmatprep.subr.mxu0 0.0
  %179 = vmatpush1.msra.mxu0 0.0
  %180 = vmatprep.subr.mxu0 0.0
  %181 = vmatpush1.msra.mxu0 0.0
  %182 = vmatprep.subr.mxu0 0.0
  %183 = vmatpush1.msra.mxu0 0.0
  %184 = vmatprep.subr.mxu0 0.0
  %185 = vmatpush1.msra.mxu0 0.0
  %186 = vmatprep.subr.mxu0 0.0
  %187 = vmatpush1.msra.mxu0 0.0
  %188 = vmatprep.subr.mxu0 0.0
  %189 = vmatpush1.msra.mxu0 0.0
  %190 = vmatprep.subr.mxu0 0.0
  %191 = vmatpush1.msra.mxu0 0.0
  %192 = vmatprep.subr.mxu0 0.0
  %193 = vmatpush1.msra.mxu0 0.0
  %194 = vmatprep.subr.mxu0 0.0
  %195 = vmatpush1.msra.mxu0 0.0
  %196 = vmatprep.mubr.f32.mxu0 0.0
  %197 = vmatmul.mubr.f32.gmra.mrb[0].mxu0 %v45
  %v198 = vpop.f32.mrb[0].mxu0
  %v199 = vadd.f32 0.0, %v198
  %v200 = vpop.f32.mrb[0].mxu0
  %201 = vmatprep.mubr.f32.mxu0 0.0
  %202 = vmatmul.mubr.f32.gmra.mrb[0].mxu0 %v48
  %v203 = vpop.f32.mrb[0].mxu0
  %v204 = vadd.f32 0.0, %v203
  %v205 = vpop.f32.mrb[0].mxu0
  %206 = vdwg.mxu0
  %v207 = vmul.f32 %v199, 0.95
  %v208 = vmul.f32 %v204, 0.95
  %v209 = vadd.f32 %v22, %v207
  %v210 = vadd.f32 %v23, %v208
  %s211 = scalar_lea.vmem %s2, 80
  %212 = vst [vmem:[%s211] sm:$0xff] %v209
  %213 = vst [vmem:[%s211 + $0x8] sm:$0xff] %v210
  %214 = vmatprep.subr.mxu0 0.0
  %215 = vmatpush1.msra.mxu0 %v28
  %216 = vmatprep.subr.mxu0 0.0
  %217 = vmatpush1.msra.mxu0 %v29
  %218 = vmatprep.subr.mxu0 0.0
  %219 = vmatpush1.msra.mxu0 0.0
  %220 = vmatprep.subr.mxu0 0.0
  %221 = vmatpush1.msra.mxu0 0.0
  %222 = vmatprep.subr.mxu0 0.0
  %223 = vmatpush1.msra.mxu0 0.0
  %224 = vmatprep.subr.mxu0 0.0
  %225 = vmatpush1.msra.mxu0 0.0
  %226 = vmatprep.subr.mxu0 0.0
  %227 = vmatpush1.msra.mxu0 0.0
  %228 = vmatprep.subr.mxu0 0.0
  %229 = vmatpush1.msra.mxu0 0.0
  %230 = vmatprep.subr.mxu0 0.0
  %231 = vmatpush1.msra.mxu0 0.0
  %232 = vmatprep.subr.mxu0 0.0
  %233 = vmatpush1.msra.mxu0 0.0
  %234 = vmatprep.subr.mxu0 0.0
  %235 = vmatpush1.msra.mxu0 0.0
  %236 = vmatprep.subr.mxu0 0.0
  %237 = vmatpush1.msra.mxu0 0.0
  %238 = vmatprep.subr.mxu0 0.0
  %239 = vmatpush1.msra.mxu0 0.0
  %240 = vmatprep.subr.mxu0 0.0
  %241 = vmatpush1.msra.mxu0 0.0
  %242 = vmatprep.subr.mxu0 0.0
  %243 = vmatpush1.msra.mxu0 0.0
  %244 = vmatprep.subr.mxu0 0.0
  %245 = vmatpush1.msra.mxu0 0.0
  %246 = vmatprep.subr.mxu0 0.0
  %247 = vmatpush1.msra.mxu0 0.0
  %248 = vmatprep.subr.mxu0 0.0
  %249 = vmatpush1.msra.mxu0 0.0
  %250 = vmatprep.subr.mxu0 0.0
  %251 = vmatpush1.msra.mxu0 0.0
  %252 = vmatprep.subr.mxu0 0.0
  %253 = vmatpush1.msra.mxu0 0.0
  %254 = vmatprep.subr.mxu0 0.0
  %255 = vmatpush1.msra.mxu0 0.0
  %256 = vmatprep.subr.mxu0 0.0
  %257 = vmatpush1.msra.mxu0 0.0
  %258 = vmatprep.subr.mxu0 0.0
  %259 = vmatpush1.msra.mxu0 0.0
  %260 = vmatprep.subr.mxu0 0.0
  %261 = vmatpush1.msra.mxu0 0.0
  %262 = vmatprep.subr.mxu0 0.0
  %263 = vmatpush1.msra.mxu0 0.0
  %264 = vmatprep.subr.mxu0 0.0
  %265 = vmatpush1.msra.mxu0 0.0
  %266 = vmatprep.subr.mxu0 0.0
  %267 = vmatpush1.msra.mxu0 0.0
  %268 = vmatprep.subr.mxu0 0.0
  %269 = vmatpush1.msra.mxu0 0.0
  %270 = vmatprep.subr.mxu0 0.0
  %271 = vmatpush1.msra.mxu0 0.0
  %272 = vmatprep.subr.mxu0 0.0
  %273 = vmatpush1.msra.mxu0 0.0
  %274 = vmatprep.subr.mxu0 0.0
  %275 = vmatpush1.msra.mxu0 0.0
  %276 = vmatprep.subr.mxu0 0.0
  %277 = vmatpush1.msra.mxu0 0.0
  %278 = vmatprep.mubr.f32.mxu0 0.0
  %279 = vmatmul.mubr.f32.gmra.mrb[0].mxu0 %v45
  %v280 = vpop.f32.mrb[0].mxu0
  %v281 = vadd.f32 0.0, %v280
  %v282 = vpop.f32.mrb[0].mxu0
  %283 = vmatprep.mubr.f32.mxu0 0.0
  %284 = vmatmul.mubr.f32.gmra.mrb[0].mxu0 %v48
  %v285 = vpop.f32.mrb[0].mxu0
  %v286 = vadd.f32 0.0, %v285
  %v287 = vpop.f32.mrb[0].mxu0
  %288 = vdwg.mxu0
  %v289 = vmul.f32 %v281, 0.95
  %v290 = vmul.f32 %v286, 0.95
  %v291 = vadd.f32 %v30, %v289
  %v292 = vadd.f32 %v31, %v290
  %s293 = scalar_lea.vmem %s2, 96
  %294 = vst [vmem:[%s293] sm:$0xff] %v291
  %295 = vst [vmem:[%s293 + $0x8] sm:$0xff] %v292
  %296 = vmatprep.subr.mxu0 0.0
  %297 = vmatpush1.msra.mxu0 %v36
  %298 = vmatprep.subr.mxu0 0.0
  %299 = vmatpush1.msra.mxu0 %v37
  %300 = vmatprep.subr.mxu0 0.0
  %301 = vmatpush1.msra.mxu0 0.0
  %302 = vmatprep.subr.mxu0 0.0
  %303 = vmatpush1.msra.mxu0 0.0
  %304 = vmatprep.subr.mxu0 0.0
  %305 = vmatpush1.msra.mxu0 0.0
  %306 = vmatprep.subr.mxu0 0.0
  %307 = vmatpush1.msra.mxu0 0.0
  %308 = vmatprep.subr.mxu0 0.0
  %309 = vmatpush1.msra.mxu0 0.0
  %310 = vmatprep.subr.mxu0 0.0
  %311 = vmatpush1.msra.mxu0 0.0
  %312 = vmatprep.subr.mxu0 0.0
  %313 = vmatpush1.msra.mxu0 0.0
  %314 = vmatprep.subr.mxu0 0.0
  %315 = vmatpush1.msra.mxu0 0.0
  %316 = vmatprep.subr.mxu0 0.0
  %317 = vmatpush1.msra.mxu0 0.0
  %318 = vmatprep.subr.mxu0 0.0
  %319 = vmatpush1.msra.mxu0 0.0
  %320 = vmatprep.subr.mxu0 0.0
  %321 = vmatpush1.msra.mxu0 0.0
  %322 = vmatprep.subr.mxu0 0.0
  %323 = vmatpush1.msra.mxu0 0.0
  %324 = vmatprep.subr.mxu0 0.0
  %325 = vmatpush1.msra.mxu0 0.0
  %326 = vmatprep.subr.mxu0 0.0
  %327 = vmatpush1.msra.mxu0 0.0
  %328 = vmatprep.subr.mxu0 0.0
  %329 = vmatpush1.msra.mxu0 0.0
  %330 = vmatprep.subr.mxu0 0.0
  %331 = vmatpush1.msra.mxu0 0.0
  %332 = vmatprep.subr.mxu0 0.0
  %333 = vmatpush1.msra.mxu0 0.0
  %334 = vmatprep.subr.mxu0 0.0
  %335 = vmatpush1.msra.mxu0 0.0
  %336 = vmatprep.subr.mxu0 0.0
  %337 = vmatpush1.msra.mxu0 0.0
  %338 = vmatprep.subr.mxu0 0.0
  %339 = vmatpush1.msra.mxu0 0.0
  %340 = vmatprep.subr.mxu0 0.0
  %341 = vmatpush1.msra.mxu0 0.0
  %342 = vmatprep.subr.mxu0 0.0
  %343 = vmatpush1.msra.mxu0 0.0
  %344 = vmatprep.subr.mxu0 0.0
  %345 = vmatpush1.msra.mxu0 0.0
  %346 = vmatprep.subr.mxu0 0.0
  %347 = vmatpush1.msra.mxu0 0.0
  %348 = vmatprep.subr.mxu0 0.0
  %349 = vmatpush1.msra.mxu0 0.0
  %350 = vmatprep.subr.mxu0 0.0
  %351 = vmatpush1.msra.mxu0 0.0
  %352 = vmatprep.subr.mxu0 0.0
  %353 = vmatpush1.msra.mxu0 0.0
  %354 = vmatprep.subr.mxu0 0.0
  %355 = vmatpush1.msra.mxu0 0.0
  %356 = vmatprep.subr.mxu0 0.0
  %357 = vmatpush1.msra.mxu0 0.0
  %358 = vmatprep.subr.mxu0 0.0
  %359 = vmatpush1.msra.mxu0 0.0
  %360 = vmatprep.mubr.f32.mxu0 0.0
  %361 = vmatmul.mubr.f32.gmra.mrb[0].mxu0 %v45
  %v362 = vpop.f32.mrb[0].mxu0
  %v363 = vadd.f32 0.0, %v362
  %v364 = vpop.f32.mrb[0].mxu0
  %365 = vmatprep.mubr.f32.mxu0 0.0
  %366 = vmatmul.mubr.f32.gmra.mrb[0].mxu0 %v48
  %v367 = vpop.f32.mrb[0].mxu0
  %v368 = vadd.f32 0.0, %v367
  %v369 = vpop.f32.mrb[0].mxu0
  %370 = vdwg.mxu0
  %v371 = vmul.f32 %v363, 0.95
  %v372 = vmul.f32 %v368, 0.95
  %v373 = vadd.f32 %v38, %v371
  %v374 = vadd.f32 %v39, %v372
  %s375 = scalar_lea.vmem %s2, 112
  %376 = vst [vmem:[%s375] sm:$0xff] %v373
  %377 = vst [vmem:[%s375 + $0x8] sm:$0xff] %v374
  %378 = vmatprep.subr.mxu0 0.0
  %379 = vmatpush1.msra.mxu0 %v127
  %380 = vmatprep.subr.mxu0 0.0
  %381 = vmatpush1.msra.mxu0 %v128
  %382 = vmatprep.subr.mxu0 0.0
  %383 = vmatpush1.msra.mxu0 0.0
  %384 = vmatprep.subr.mxu0 0.0
  %385 = vmatpush1.msra.mxu0 0.0
  %386 = vmatprep.subr.mxu0 0.0
  %387 = vmatpush1.msra.mxu0 0.0
  %388 = vmatprep.subr.mxu0 0.0
  %389 = vmatpush1.msra.mxu0 0.0
  %390 = vmatprep.subr.mxu0 0.0
  %391 = vmatpush1.msra.mxu0 0.0
  %392 = vmatprep.subr.mxu0 0.0
  %393 = vmatpush1.msra.mxu0 0.0
  %394 = vmatprep.subr.mxu0 0.0
  %395 = vmatpush1.msra.mxu0 0.0
  %396 = vmatprep.subr.mxu0 0.0
  %397 = vmatpush1.msra.mxu0 0.0
  %398 = vmatprep.subr.mxu0 0.0
  %399 = vmatpush1.msra.mxu0 0.0
  %400 = vmatprep.subr.mxu0 0.0
  %401 = vmatpush1.msra.mxu0 0.0
  %402 = vmatprep.subr.mxu0 0.0
  %403 = vmatpush1.msra.mxu0 0.0
  %404 = vmatprep.subr.mxu0 0.0
  %405 = vmatpush1.msra.mxu0 0.0
  %406 = vmatprep.subr.mxu0 0.0
  %407 = vmatpush1.msra.mxu0 0.0
  %408 = vmatprep.subr.mxu0 0.0
  %409 = vmatpush1.msra.mxu0 0.0
  %410 = vmatprep.subr.mxu0 0.0
  %411 = vmatpush1.msra.mxu0 0.0
  %412 = vmatprep.subr.mxu0 0.0
  %413 = vmatpush1.msra.mxu0 0.0
  %414 = vmatprep.subr.mxu0 0.0
  %415 = vmatpush1.msra.mxu0 0.0
  %416 = vmatprep.subr.mxu0 0.0
  %417 = vmatpush1.msra.mxu0 0.0
  %418 = vmatprep.subr.mxu0 0.0
  %419 = vmatpush1.msra.mxu0 0.0
  %420 = vmatprep.subr.mxu0 0.0
  %421 = vmatpush1.msra.mxu0 0.0
  %422 = vmatprep.subr.mxu0 0.0
  %423 = vmatpush1.msra.mxu0 0.0
  %424 = vmatprep.subr.mxu0 0.0
  %425 = vmatpush1.msra.mxu0 0.0
  %426 = vmatprep.subr.mxu0 0.0
  %427 = vmatpush1.msra.mxu0 0.0
  %428 = vmatprep.subr.mxu0 0.0
  %429 = vmatpush1.msra.mxu0 0.0
  %430 = vmatprep.subr.mxu0 0.0
  %431 = vmatpush1.msra.mxu0 0.0
  %432 = vmatprep.subr.mxu0 0.0
  %433 = vmatpush1.msra.mxu0 0.0
  %434 = vmatprep.subr.mxu0 0.0
  %435 = vmatpush1.msra.mxu0 0.0
  %436 = vmatprep.subr.mxu0 0.0
  %437 = vmatpush1.msra.mxu0 0.0
  %438 = vmatprep.subr.mxu0 0.0
  %439 = vmatpush1.msra.mxu0 0.0
  %440 = vmatprep.subr.mxu0 0.0
  %441 = vmatpush1.msra.mxu0 0.0
  %442 = vmatprep.mubr.f32.mxu0 0.0
  %443 = vmatmul.mubr.f32.gmra.mrb[0].mxu0 %v45
  %v444 = vpop.f32.mrb[0].mxu0
  %v445 = vadd.f32 0.0, %v444
  %v446 = vpop.f32.mrb[0].mxu0
  %447 = vmatprep.mubr.f32.mxu0 0.0
  %448 = vmatmul.mubr.f32.gmra.mrb[0].mxu0 %v48
  %v449 = vpop.f32.mrb[0].mxu0
  %v450 = vadd.f32 0.0, %v449
  %v451 = vpop.f32.mrb[0].mxu0
  %452 = vdwg.mxu0
  %v453 = vmul.f32 %v445, 0.95
  %v454 = vmul.f32 %v450, 0.95
  %v455 = vadd.f32 %v15, %v453
  %v456 = vadd.f32 %v16, %v454
  %s457 = scalar_lea.vmem %s2, 128
  %458 = vst [vmem:[%s457] sm:$0xff] %v455
  %459 = vst [vmem:[%s457 + $0x8] sm:$0xff] %v456
  %460 = vmatprep.subr.mxu0 0.0
  %461 = vmatpush1.msra.mxu0 %v209
  %462 = vmatprep.subr.mxu0 0.0
  %463 = vmatpush1.msra.mxu0 %v210
  %464 = vmatprep.subr.mxu0 0.0
  %465 = vmatpush1.msra.mxu0 0.0
  %466 = vmatprep.subr.mxu0 0.0
  %467 = vmatpush1.msra.mxu0 0.0
  %468 = vmatprep.subr.mxu0 0.0
  %469 = vmatpush1.msra.mxu0 0.0
  %470 = vmatprep.subr.mxu0 0.0
  %471 = vmatpush1.msra.mxu0 0.0
  %472 = vmatprep.subr.mxu0 0.0
  %473 = vmatpush1.msra.mxu0 0.0
  %474 = vmatprep.subr.mxu0 0.0
  %475 = vmatpush1.msra.mxu0 0.0
  %476 = vmatprep.subr.mxu0 0.0
  %477 = vmatpush1.msra.mxu0 0.0
  %478 = vmatprep.subr.mxu0 0.0
  %479 = vmatpush1.msra.mxu0 0.0
  %480 = vmatprep.subr.mxu0 0.0
  %481 = vmatpush1.msra.mxu0 0.0
  %482 = vmatprep.subr.mxu0 0.0
  %483 = vmatpush1.msra.mxu0 0.0
  %484 = vmatprep.subr.mxu0 0.0
  %485 = vmatpush1.msra.mxu0 0.0
  %486 = vmatprep.subr.mxu0 0.0
  %487 = vmatpush1.msra.mxu0 0.0
  %488 = vmatprep.subr.mxu0 0.0
  %489 = vmatpush1.msra.mxu0 0.0
  %490 = vmatprep.subr.mxu0 0.0
  %491 = vmatpush1.msra.mxu0 0.0
  %492 = vmatprep.subr.mxu0 0.0
  %493 = vmatpush1.msra.mxu0 0.0
  %494 = vmatprep.subr.mxu0 0.0
  %495 = vmatpush1.msra.mxu0 0.0
  %496 = vmatprep.subr.mxu0 0.0
  %497 = vmatpush1.msra.mxu0 0.0
  %498 = vmatprep.subr.mxu0 0.0
  %499 = vmatpush1.msra.mxu0 0.0
  %500 = vmatprep.subr.mxu0 0.0
  %501 = vmatpush1.msra.mxu0 0.0
  %502 = vmatprep.subr.mxu0 0.0
  %503 = vmatpush1.msra.mxu0 0.0
  %504 = vmatprep.subr.mxu0 0.0
  %505 = vmatpush1.msra.mxu0 0.0
  %506 = vmatprep.subr.mxu0 0.0
  %507 = vmatpush1.msra.mxu0 0.0
  %508 = vmatprep.subr.mxu0 0.0
  %509 = vmatpush1.msra.mxu0 0.0
  %510 = vmatprep.subr.mxu0 0.0
  %511 = vmatpush1.msra.mxu0 0.0
  %512 = vmatprep.subr.mxu0 0.0
  %513 = vmatpush1.msra.mxu0 0.0
  %514 = vmatprep.subr.mxu0 0.0
  %515 = vmatpush1.msra.mxu0 0.0
  %516 = vmatprep.subr.mxu0 0.0
  %517 = vmatpush1.msra.mxu0 0.0
  %518 = vmatprep.subr.mxu0 0.0
  %519 = vmatpush1.msra.mxu0 0.0
  %520 = vmatprep.subr.mxu0 0.0
  %521 = vmatpush1.msra.mxu0 0.0
  %522 = vmatprep.subr.mxu0 0.0
  %523 = vmatpush1.msra.mxu0 0.0
  %524 = vmatprep.mubr.f32.mxu0 0.0
  %525 = vmatmul.mubr.f32.gmra.mrb[0].mxu0 %v45
  %v526 = vpop.f32.mrb[0].mxu0
  %v527 = vadd.f32 0.0, %v526
  %v528 = vpop.f32.mrb[0].mxu0
  %529 = vmatprep.mubr.f32.mxu0 0.0
  %530 = vmatmul.mubr.f32.gmra.mrb[0].mxu0 %v48
  %v531 = vpop.f32.mrb[0].mxu0
  %v532 = vadd.f32 0.0, %v531
  %v533 = vpop.f32.mrb[0].mxu0
  %534 = vdwg.mxu0
  %v535 = vmul.f32 %v527, 0.95
  %v536 = vmul.f32 %v532, 0.95
  %v537 = vadd.f32 %v22, %v535
  %v538 = vadd.f32 %v23, %v536
  %s539 = scalar_lea.vmem %s2, 144
  %540 = vst [vmem:[%s539] sm:$0xff] %v537
  %541 = vst [vmem:[%s539 + $0x8] sm:$0xff] %v538
  %542 = vmatprep.subr.mxu0 0.0
  %543 = vmatpush1.msra.mxu0 %v291
  %544 = vmatprep.subr.mxu0 0.0
  %545 = vmatpush1.msra.mxu0 %v292
  %546 = vmatprep.subr.mxu0 0.0
  %547 = vmatpush1.msra.mxu0 0.0
  %548 = vmatprep.subr.mxu0 0.0
  %549 = vmatpush1.msra.mxu0 0.0
  %550 = vmatprep.subr.mxu0 0.0
  %551 = vmatpush1.msra.mxu0 0.0
  %552 = vmatprep.subr.mxu0 0.0
  %553 = vmatpush1.msra.mxu0 0.0
  %554 = vmatprep.subr.mxu0 0.0
  %555 = vmatpush1.msra.mxu0 0.0
  %556 = vmatprep.subr.mxu0 0.0
  %557 = vmatpush1.msra.mxu0 0.0
  %558 = vmatprep.subr.mxu0 0.0
  %559 = vmatpush1.msra.mxu0 0.0
  %560 = vmatprep.subr.mxu0 0.0
  %561 = vmatpush1.msra.mxu0 0.0
  %562 = vmatprep.subr.mxu0 0.0
  %563 = vmatpush1.msra.mxu0 0.0
  %564 = vmatprep.subr.mxu0 0.0
  %565 = vmatpush1.msra.mxu0 0.0
  %566 = vmatprep.subr.mxu0 0.0
  %567 = vmatpush1.msra.mxu0 0.0
  %568 = vmatprep.subr.mxu0 0.0
  %569 = vmatpush1.msra.mxu0 0.0
  %570 = vmatprep.subr.mxu0 0.0
  %571 = vmatpush1.msra.mxu0 0.0
  %572 = vmatprep.subr.mxu0 0.0
  %573 = vmatpush1.msra.mxu0 0.0
  %574 = vmatprep.subr.mxu0 0.0
  %575 = vmatpush1.msra.mxu0 0.0
  %576 = vmatprep.subr.mxu0 0.0
  %577 = vmatpush1.msra.mxu0 0.0
  %578 = vmatprep.subr.mxu0 0.0
  %579 = vmatpush1.msra.mxu0 0.0
  %580 = vmatprep.subr.mxu0 0.0
  %581 = vmatpush1.msra.mxu0 0.0
  %582 = vmatprep.subr.mxu0 0.0
  %583 = vmatpush1.msra.mxu0 0.0
  %584 = vmatprep.subr.mxu0 0.0
  %585 = vmatpush1.msra.mxu0 0.0
  %586 = vmatprep.subr.mxu0 0.0
  %587 = vmatpush1.msra.mxu0 0.0
  %588 = vmatprep.subr.mxu0 0.0
  %589 = vmatpush1.msra.mxu0 0.0
  %590 = vmatprep.subr.mxu0 0.0
  %591 = vmatpush1.msra.mxu0 0.0
  %592 = vmatprep.subr.mxu0 0.0
  %593 = vmatpush1.msra.mxu0 0.0
  %594 = vmatprep.subr.mxu0 0.0
  %595 = vmatpush1.msra.mxu0 0.0
  %596 = vmatprep.subr.mxu0 0.0
  %597 = vmatpush1.msra.mxu0 0.0
  %598 = vmatprep.subr.mxu0 0.0
  %599 = vmatpush1.msra.mxu0 0.0
  %600 = vmatprep.subr.mxu0 0.0
  %601 = vmatpush1.msra.mxu0 0.0
  %602 = vmatprep.subr.mxu0 0.0
  %603 = vmatpush1.msra.mxu0 0.0
  %604 = vmatprep.subr.mxu0 0.0
  %605 = vmatpush1.msra.mxu0 0.0
  %606 = vmatprep.mubr.f32.mxu0 0.0
  %607 = vmatmul.mubr.f32.gmra.mrb[0].mxu0 %v45
  %v608 = vpop.f32.mrb[0].mxu0
  %v609 = vadd.f32 0.0, %v608
  %v610 = vpop.f32.mrb[0].mxu0
  %611 = vmatprep.mubr.f32.mxu0 0.0
  %612 = vmatmul.mubr.f32.gmra.mrb[0].mxu0 %v48
  %v613 = vpop.f32.mrb[0].mxu0
  %v614 = vadd.f32 0.0, %v613
  %v615 = vpop.f32.mrb[0].mxu0
  %616 = vdwg.mxu0
  %v617 = vmul.f32 %v609, 0.95
  %v618 = vmul.f32 %v614, 0.95
  %v619 = vadd.f32 %v30, %v617
  %v620 = vadd.f32 %v31, %v618
  %s621 = scalar_lea.vmem %s2, 160
  %622 = vst [vmem:[%s621] sm:$0xff] %v619
  %623 = vst [vmem:[%s621 + $0x8] sm:$0xff] %v620
  %624 = vmatprep.subr.mxu0 0.0
  %625 = vmatpush1.msra.mxu0 %v373
  %626 = vmatprep.subr.mxu0 0.0
  %627 = vmatpush1.msra.mxu0 %v374
  %628 = vmatprep.subr.mxu0 0.0
  %629 = vmatpush1.msra.mxu0 0.0
  %630 = vmatprep.subr.mxu0 0.0
  %631 = vmatpush1.msra.mxu0 0.0
  %632 = vmatprep.subr.mxu0 0.0
  %633 = vmatpush1.msra.mxu0 0.0
  %634 = vmatprep.subr.mxu0 0.0
  %635 = vmatpush1.msra.mxu0 0.0
  %636 = vmatprep.subr.mxu0 0.0
  %637 = vmatpush1.msra.mxu0 0.0
  %638 = vmatprep.subr.mxu0 0.0
  %639 = vmatpush1.msra.mxu0 0.0
  %640 = vmatprep.subr.mxu0 0.0
  %641 = vmatpush1.msra.mxu0 0.0
  %642 = vmatprep.subr.mxu0 0.0
  %643 = vmatpush1.msra.mxu0 0.0
  %644 = vmatprep.subr.mxu0 0.0
  %645 = vmatpush1.msra.mxu0 0.0
  %646 = vmatprep.subr.mxu0 0.0
  %647 = vmatpush1.msra.mxu0 0.0
  %648 = vmatprep.subr.mxu0 0.0
  %649 = vmatpush1.msra.mxu0 0.0
  %650 = vmatprep.subr.mxu0 0.0
  %651 = vmatpush1.msra.mxu0 0.0
  %652 = vmatprep.subr.mxu0 0.0
  %653 = vmatpush1.msra.mxu0 0.0
  %654 = vmatprep.subr.mxu0 0.0
  %655 = vmatpush1.msra.mxu0 0.0
  %656 = vmatprep.subr.mxu0 0.0
  %657 = vmatpush1.msra.mxu0 0.0
  %658 = vmatprep.subr.mxu0 0.0
  %659 = vmatpush1.msra.mxu0 0.0
  %660 = vmatprep.subr.mxu0 0.0
  %661 = vmatpush1.msra.mxu0 0.0
  %662 = vmatprep.subr.mxu0 0.0
  %663 = vmatpush1.msra.mxu0 0.0
  %664 = vmatprep.subr.mxu0 0.0
  %665 = vmatpush1.msra.mxu0 0.0
  %666 = vmatprep.subr.mxu0 0.0
  %667 = vmatpush1.msra.mxu0 0.0
  %668 = vmatprep.subr.mxu0 0.0
  %669 = vmatpush1.msra.mxu0 0.0
  %670 = vmatprep.subr.mxu0 0.0
  %671 = vmatpush1.msra.mxu0 0.0
  %672 = vmatprep.subr.mxu0 0.0
  %673 = vmatpush1.msra.mxu0 0.0
  %674 = vmatprep.subr.mxu0 0.0
  %675 = vmatpush1.msra.mxu0 0.0
  %676 = vmatprep.subr.mxu0 0.0
  %677 = vmatpush1.msra.mxu0 0.0
  %678 = vmatprep.subr.mxu0 0.0
  %679 = vmatpush1.msra.mxu0 0.0
  %680 = vmatprep.subr.mxu0 0.0
  %681 = vmatpush1.msra.mxu0 0.0
  %682 = vmatprep.subr.mxu0 0.0
  %683 = vmatpush1.msra.mxu0 0.0
  %684 = vmatprep.subr.mxu0 0.0
  %685 = vmatpush1.msra.mxu0 0.0
  %686 = vmatprep.subr.mxu0 0.0
  %687 = vmatpush1.msra.mxu0 0.0
  %688 = vmatprep.mubr.f32.mxu0 0.0
  %689 = vmatmul.mubr.f32.gmra.mrb[0].mxu0 %v45
  %v690 = vpop.f32.mrb[0].mxu0
  %v691 = vadd.f32 0.0, %v690
  %v692 = vpop.f32.mrb[0].mxu0
  %693 = vmatprep.mubr.f32.mxu0 0.0
  %694 = vmatmul.mubr.f32.gmra.mrb[0].mxu0 %v48
  %v695 = vpop.f32.mrb[0].mxu0
  %v696 = vadd.f32 0.0, %v695
  %v697 = vpop.f32.mrb[0].mxu0
  %698 = vdwg.mxu0
  %v699 = vmul.f32 %v691, 0.95
  %v700 = vmul.f32 %v696, 0.95
  %v701 = vadd.f32 %v38, %v699
  %v702 = vadd.f32 %v39, %v700
  %s703 = scalar_lea.vmem %s2, 176
  %704 = vst [vmem:[%s703] sm:$0xff] %v701
  %705 = vst [vmem:[%s703 + $0x8] sm:$0xff] %v702
  // Predicated region
  $region10: #{mixprop_forward.2} parent=0 // pred_check
    _
  $region11: #{mixprop_forward.2} parent=0 // pred_check_branch
    %707 = sbr.rel (0) target = $region13
  $region12: #{mixprop_forward.2} parent=0 // pred_region
    _
  $region13: #{mixprop_forward.2} parent=0 // pred_fallthru
    _
  // Predicated region
  $region14: #{mixprop_forward.2} parent=0 // pred_check
    _
  $region15: #{mixprop_forward.2} parent=0 // pred_check_branch
    %709 = sbr.rel (0) target = $region17
  $region16: #{mixprop_forward.2} parent=0 // pred_region
    _
  $region17: #{mixprop_forward.2} parent=0 // pred_fallthru
    _

</llo_original>
